<compile_context>
chip_gen: v6e
topology: v6e:2x2x1
jax: 0.10.0
libtpu: 0.0.40
codegen_flags: <defaults>
</compile_context>

<pallas_src>
import functools
import math

import jax
import jax.numpy as jnp
from jax import lax
from jax.experimental import pallas as pl
from jax.experimental.pallas import tpu as pltpu


def _round_up(x, m):
    return ((x + m - 1) // m) * m


def _bottleneck_kernel(x_hbm, w1_ref, b1_ref, w2_ref, b2_ref, w3_ref, b3_ref,
                       o_ref, x_buf, sem, *, img_w):
    n = pl.program_id(0)          # batch index
    t = pl.program_id(1)          # row-tile index
    nt = pl.num_programs(1)

    RT = o_ref.shape[1]           # rows (pixels) produced per step
    HALO = img_w                  # one image row of halo on each side
    Rbuf = x_buf.shape[0]         # RT + 2*HALO
    HW_total = x_hbm.shape[1]

    # ---- fetch input tile + 1-row halo on each side (manual DMA) -------------
    # Boundary tiles use a clamped source start; the fetched rows that fall
    # outside the image are never used (y1 is zeroed there below).
    cp_main = pltpu.make_async_copy(
        x_hbm.at[n, pl.ds(t * RT, RT)], x_buf.at[pl.ds(HALO, RT)], sem.at[0])
    top_src = jnp.maximum(t * RT - HALO, 0)
    cp_top = pltpu.make_async_copy(
        x_hbm.at[n, pl.ds(top_src, HALO)], x_buf.at[pl.ds(0, HALO)], sem.at[1])
    bot_src = jnp.minimum((t + 1) * RT, HW_total - HALO)
    cp_bot = pltpu.make_async_copy(
        x_hbm.at[n, pl.ds(bot_src, HALO)], x_buf.at[pl.ds(HALO + RT, HALO)],
        sem.at[2])
    cp_main.start()
    cp_top.start()
    cp_bot.start()
    cp_top.wait()
    cp_bot.wait()
    cp_main.wait()

    # ---- conv1 (1x1, BN folded) + bias + relu on tile + halo rows ------------
    x_bf = x_buf[...].astype(jnp.bfloat16)
    y1 = jnp.dot(x_bf, w1_ref[...], preferred_element_type=jnp.float32)
    y1 = jnp.maximum(y1 + b1_ref[...], 0.0)                  # (Rbuf, width_p)

    # conv2's zero padding applies to y1 (post bn1/relu), so halo rows that lie
    # outside the image must be exactly zero (not relu(b1) / clamped data).
    row = lax.broadcasted_iota(jnp.int32, (Rbuf, 1), 0)
    outside = ((row < HALO) & (t == 0)) | ((row >= HALO + RT) & (t == nt - 1))
    y1 = jnp.where(outside, 0.0, y1)

    # ---- conv2 (3x3, stride 1, pad 1) as ONE fused K = 9*width matmul --------
    # Tap (dh, dw) for output row r reads buffer row r + dh*W + dw - 1.  Left /
    # right image edges are handled by two column-masked copies of y1 (zeroing
    # the source column that would wrap across a row boundary), each reused by
    # the three taps of that dw.  Row shifts use pltpu.roll (XLU) on f32 and
    # each tap is cast to bf16 before concatenation along the contraction dim.
    col = row % img_w
    src_by_dw = (jnp.where(col == img_w - 1, 0.0, y1),        # dw == 0 taps
                 y1,                                          # dw == 1 taps
                 jnp.where(col == 0, 0.0, y1))                # dw == 2 taps
    taps = []
    for dh in range(3):
        for dw in range(3):
            off = dh * img_w + dw - 1
            s = src_by_dw[dw]
            if off != 0:
                s = pltpu.roll(s, shift=(-off) % Rbuf, axis=0)
            taps.append(s[:RT].astype(jnp.bfloat16))
    im2col = jnp.concatenate(taps, axis=1)                    # (RT, 9*width_p)

    y2 = jnp.dot(im2col, w2_ref[...], preferred_element_type=jnp.float32)
    y2 = jnp.maximum(y2 + b2_ref[...], 0.0)                   # (RT, width_p)

    # ---- conv3 (1x1) + bias, identity residual, relu -------------------------
    y3 = jnp.dot(y2.astype(jnp.bfloat16), w3_ref[...],
                 preferred_element_type=jnp.float32)
    y3 = y3 + b3_ref[...]                                     # (RT, Cout_p)

    res = x_buf[pl.ds(HALO, RT), :].astype(jnp.float32)       # deferred read
    o_ref[0] = jnp.maximum(y3 + res, 0.0).astype(o_ref.dtype)


def prepare_params(params, *, lane=128):
    """Fold eval-mode BN scale into weights, zero-pad channel dims to lane
    multiples, cast weights to bf16, and flatten the 3x3 weight for the fused
    K=9*width matmul.  Call once at model init."""
    (w1, s1, b1, w2, s2, b2, w3, s3, b3) = params
    cin, fp = w1.shape                      # conv1: (Cin, first_planes)
    width = w2.shape[3]                     # conv2: (3, 3, first_planes, width)
    cout = w3.shape[1]                      # conv3: (width, outplanes)
    cin_p, fp_p = _round_up(cin, lane), _round_up(fp, lane)
    width_p, cout_p = _round_up(width, lane), _round_up(cout, lane)

    w1f = (w1 * s1).astype(jnp.bfloat16)
    w2f = (w2 * s2).astype(jnp.bfloat16)
    w3f = (w3 * s3).astype(jnp.bfloat16)

    w1p = jnp.pad(w1f, ((0, cin_p - cin), (0, fp_p - fp)))
    w2p = jnp.pad(w2f, ((0, 0), (0, 0),
                        (0, fp_p - fp), (0, width_p - width)))
    w2p = w2p.reshape(9 * fp_p, width_p)    # (dh, dw, cin) flattened -> K dim
    w3p = jnp.pad(w3f, ((0, width_p - width), (0, cout_p - cout)))
    b1p = jnp.pad(b1.astype(jnp.float32), ((0, 0), (0, fp_p - fp)))
    b2p = jnp.pad(b2.astype(jnp.float32), ((0, 0), (0, width_p - width)))
    b3p = jnp.pad(b3.astype(jnp.float32), ((0, 0), (0, cout_p - cout)))
    return (w1p, b1p, w2p, b2p, w3p, b3p)


def bottleneck_forward_nhwc(x, prep, *, tile_h=None):
    """x: (N, H, W, Cin) NHWC (f32 or bf16).  Returns same layout/dtype.
    `prep` comes from prepare_params().  Identity shortcut => Cin == Cout."""
    w1p, b1p, w2p, b2p, w3p, b3p = prep
    N, H, W, Cin = x.shape
    Cin_p, fp_p = w1p.shape
    width_p = w3p.shape[0]
    Cout_p = w3p.shape[1]
    Cout = Cin                                 # identity shortcut
    assert Cin_p == Cout_p, "identity shortcut requires inplanes == planes*exp"

    if tile_h is None:
        # Largest divisor of H whose row-tile stays a few hundred/thousand rows.
        tile_h = 1
        for d in range(H, 0, -1):
            if H % d == 0 and d * W <= 1024:
                tile_h = d
                break
    assert H % tile_h == 0, "tile_h must divide H"
    nt = H // tile_h
    RT = tile_h * W
    HW = H * W

    xp = x if Cin_p == Cin else jnp.pad(
        x, ((0, 0), (0, 0), (0, 0), (0, Cin_p - Cin)))
    xr = xp.reshape(N, HW, Cin_p)              # free row-major reshape in HBM

    def const_spec(a):                         # full-array operand, fixed block
        return pl.BlockSpec(a.shape, lambda n, t, _nd=a.ndim: (0,) * _nd)

    kernel = functools.partial(_bottleneck_kernel, img_w=W)

    flops = 2 * N * HW * (Cin_p * fp_p + 9 * fp_p * width_p + width_p * Cout_p)
    bytes_accessed = ((N * HW * (Cin_p + Cout_p)) * xr.dtype.itemsize
                      + 2 * (w1p.size + w2p.size + w3p.size)
                      + 4 * (b1p.size + b2p.size + b3p.size))

    out = pl.pallas_call(
        kernel,
        out_shape=jax.ShapeDtypeStruct((N, HW, Cout_p), x.dtype),
        grid_spec=pltpu.PrefetchScalarGridSpec(
            num_scalar_prefetch=0,
            grid=(N, nt),
            in_specs=[
                pl.BlockSpec(memory_space=pl.ANY),   # x: raw HBM, manual halo DMA
                const_spec(w1p), const_spec(b1p),
                const_spec(w2p), const_spec(b2p),
                const_spec(w3p), const_spec(b3p),
            ],
            out_specs=pl.BlockSpec((1, RT, Cout_p), lambda n, t: (n, t, 0)),
            scratch_shapes=[
                pltpu.VMEM((RT + 2 * W, Cin_p), x.dtype),   # tile + halo rows
                pltpu.SemaphoreType.DMA((3,)),
            ],
        ),
        compiler_params=pltpu.CompilerParams(
            dimension_semantics=("parallel", "parallel"),
            # <= 48 MiB is safe on every generation (v7x has 64 MiB physical).
            vmem_limit_bytes=48 * 1024 * 1024),
        cost_estimate=pl.CostEstimate(flops=int(flops), transcendentals=0,
                                      bytes_accessed=int(bytes_accessed)),
    )(xr, w1p, b1p, w2p, b2p, w3p, b3p)

    out = out.reshape(N, H, W, Cout_p)
    if Cout_p != Cout:
        out = out[..., :Cout]
    return out


def bottleneck_forward_nchw(x_nchw, prep, *, tile_h=None):
    """PyTorch-interface (NCHW) wrapper.  Prefer the NHWC entry point: each
    transpose is an extra full HBM read+write of the activation tensor."""
    x = jnp.transpose(x_nchw, (0, 2, 3, 1))
    y = bottleneck_forward_nhwc(x, prep, tile_h=tile_h)
    return jnp.transpose(y, (0, 3, 1, 2))


def _fold_bn(gamma, beta, mean, var, eps=1e-5):
    scale = gamma / jnp.sqrt(var + eps)
    bias = beta - mean * scale
    return scale[None, :], bias[None, :]        # (1, C)


def make_params(key, inplanes, planes, base_width=64, cardinality=1,
                reduce_first=1, expansion=2):
    width = int(math.floor(planes * (base_width / 64)) * cardinality)
    first_planes = width // reduce_first
    outplanes = planes * expansion
    ks = jax.random.split(key, 6)

    # conv weights in kernel-friendly layout: 1x1 -> (Cin, Cout); 3x3 -> HWIO.
    w1 = jax.random.normal(ks[0], (inplanes, first_planes), jnp.float32) * 0.1
    w2 = jax.random.normal(ks[1], (3, 3, first_planes, width), jnp.float32) * 0.1
    w3 = jax.random.normal(ks[2], (width, outplanes), jnp.float32) * 0.1

    def bn(k, c):
        k1, k2, k3, k4 = jax.random.split(k, 4)
        gamma = 1.0 + 0.1 * jax.random.normal(k1, (c,), jnp.float32)
        beta = 0.1 * jax.random.normal(k2, (c,), jnp.float32)
        mean = 0.1 * jax.random.normal(k3, (c,), jnp.float32)
        var = jnp.abs(jax.random.normal(k4, (c,), jnp.float32)) + 0.5
        return _fold_bn(gamma, beta, mean, var)

    s1, b1 = bn(ks[3], first_planes)
    s2, b2 = bn(ks[4], width)
    s3, b3 = bn(ks[5], outplanes)
    return (w1, s1, b1, w2, s2, b2, w3, s3, b3)


def _reference_nhwc(x, params):
    """Pure-JAX f32 NHWC reference mirroring the PyTorch forward (eval BN)."""
    (w1, s1, b1, w2, s2, b2, w3, s3, b3) = params

    def conv1x1(x, w):
        return lax.conv_general_dilated(
            x, w[None, None], (1, 1), "VALID",
            dimension_numbers=("NHWC", "HWIO", "NHWC"))

    def conv3x3(x, w):
        return lax.conv_general_dilated(
            x, w, (1, 1), [(1, 1), (1, 1)],
            dimension_numbers=("NHWC", "HWIO", "NHWC"))

    def bn(x, s, b):
        return x * s[0] + b[0]

    shortcut = x
    y = jax.nn.relu(bn(conv1x1(x, w1), s1, b1))
    y = jax.nn.relu(bn(conv3x3(y, w2), s2, b2))
    y = bn(conv1x1(y, w3), s3, b3)
    return jax.nn.relu(y + shortcut)


if __name__ == "__main__":
    # planes=4 -> outplanes = 8; inplanes = 8 so the identity shortcut is valid
    # (matches ResNet usage where downsample=None <=> shapes match).
    N, planes, H, W = 2, 4, 16, 16
    inplanes = planes * 2

    key = jax.random.PRNGKey(0)
    kx, kp = jax.random.split(key)
    x_nhwc = jax.random.normal(kx, (N, H, W, inplanes), jnp.float32)
    params = make_params(kp, inplanes, planes)
    prep = prepare_params(params)            # fold/pad/cast once at init

    # Multi-tile path: 4 row tiles per image (exercises interior + boundary halos).
    out = bottleneck_forward_nhwc(x_nhwc, prep, tile_h=4)
    out = jax.block_until_ready(out)

    ref = _reference_nhwc(x_nhwc, params)
    assert out.shape == ref.shape
    max_err = float(jnp.max(jnp.abs(out - ref)))
    assert jnp.allclose(out, ref, atol=1e-2, rtol=1e-2), \
        f"mismatch vs reference (max abs err {max_err})"

    # PyTorch-layout (NCHW) compatibility path + auto tile selection (1 tile).
    x_nchw = jnp.transpose(x_nhwc, (0, 3, 1, 2))
    out_nchw = jax.block_until_ready(bottleneck_forward_nchw(x_nchw, prep))
    assert jnp.allclose(out_nchw, jnp.transpose(ref, (0, 3, 1, 2)),
                        atol=1e-2, rtol=1e-2), "NCHW wrapper mismatch"

    print("KERNEL_OK")
</pallas_src>

<mosaic_0001>
module attributes {stable_mosaic.version = 11 : i64} {
  func.func @_bottleneck_kernel(%arg0: i32, %arg1: i32, %arg2: memref<2x256x128xf32, #tpu.memory_space<any>>, %arg3: memref<128x128xbf16, #tpu.memory_space<vmem>>, %arg4: memref<1x128xf32, #tpu.memory_space<vmem>>, %arg5: memref<1152x128xbf16, #tpu.memory_space<vmem>>, %arg6: memref<1x128xf32, #tpu.memory_space<vmem>>, %arg7: memref<128x128xbf16, #tpu.memory_space<vmem>>, %arg8: memref<1x128xf32, #tpu.memory_space<vmem>>, %arg9: memref<1x64x128xf32, #tpu.memory_space<vmem>>, %arg10: memref<96x128xf32, #tpu.memory_space<vmem>>, %arg11: memref<3x!tpu.dma_semaphore, #tpu.memory_space<semaphore_mem>>) attributes {dimension_semantics = [#tpu.dimension_semantics<parallel>, #tpu.dimension_semantics<parallel>], iteration_bounds = array<i64: 2, 4>, scalar_prefetch = 0 : i64, scratch_operands = 2 : i64, tpu.core_type = #tpu.core_type<tc>, window_params = [{}, {pipeline_mode = #tpu.pipeline_mode<synchronous>, transform_indices = @transform_1, window_bounds = array<i64: 128, 128>}, {pipeline_mode = #tpu.pipeline_mode<synchronous>, transform_indices = @transform_2, window_bounds = array<i64: 1, 128>}, {pipeline_mode = #tpu.pipeline_mode<synchronous>, transform_indices = @transform_3, window_bounds = array<i64: 1152, 128>}, {pipeline_mode = #tpu.pipeline_mode<synchronous>, transform_indices = @transform_4, window_bounds = array<i64: 1, 128>}, {pipeline_mode = #tpu.pipeline_mode<synchronous>, transform_indices = @transform_5, window_bounds = array<i64: 128, 128>}, {pipeline_mode = #tpu.pipeline_mode<synchronous>, transform_indices = @transform_6, window_bounds = array<i64: 1, 128>}, {transform_indices = @transform_7, window_bounds = array<i64: 1, 64, 128>}]} {
    %c64_i32 = arith.constant 64 : i32
    %0 = arith.muli %arg1, %c64_i32 : i32
    %c64_i32_0 = arith.constant 64 : i32
    %1 = arith.muli %arg1, %c64_i32_0 : i32
    %c16_i32 = arith.constant 16 : i32
    %2 = arith.subi %1, %c16_i32 : i32
    %c0_i32 = arith.constant 0 : i32
    %3 = arith.maxsi %2, %c0_i32 : i32
    %c1_i32 = arith.constant 1 : i32
    %4 = arith.addi %arg1, %c1_i32 : i32
    %c64_i32_1 = arith.constant 64 : i32
    %5 = arith.muli %4, %c64_i32_1 : i32
    %c240_i32 = arith.constant 240 : i32
    %6 = arith.minsi %5, %c240_i32 : i32
    %c0_i32_2 = arith.constant 0 : i32
    %c0_i32_3 = arith.constant 0 : i32
    %7 = tpu.memref_slice %arg2[%arg0, %0, %c0_i32_3] : memref<2x256x128xf32, #tpu.memory_space<any>> -> memref<1x64x128xf32, #tpu.memory_space<any>>
    %8 = tpu.memref_squeeze %7 : memref<1x64x128xf32, #tpu.memory_space<any>> -> memref<64x128xf32, #tpu.memory_space<any>>
    %c16_i32_4 = arith.constant 16 : i32
    %c0_i32_5 = arith.constant 0 : i32
    %9 = tpu.memref_slice %arg10[%c16_i32_4, %c0_i32_5] : memref<96x128xf32, #tpu.memory_space<vmem>> -> memref<64x128xf32, #tpu.memory_space<vmem>>
    %10 = tpu.memref_slice %arg11[%c0_i32_2] : memref<3x!tpu.dma_semaphore, #tpu.memory_space<semaphore_mem>> -> memref<1x!tpu.dma_semaphore, #tpu.memory_space<semaphore_mem>>
    %11 = tpu.memref_squeeze %10 : memref<1x!tpu.dma_semaphore, #tpu.memory_space<semaphore_mem>> -> memref<!tpu.dma_semaphore, #tpu.memory_space<semaphore_mem>>
    tpu.enqueue_dma source(%8 : memref<64x128xf32, #tpu.memory_space<any>>) target(%9 : memref<64x128xf32, #tpu.memory_space<vmem>>) target_semaphore(%11 : memref<!tpu.dma_semaphore, #tpu.memory_space<semaphore_mem>>)
    %c1_i32_6 = arith.constant 1 : i32
    %c0_i32_7 = arith.constant 0 : i32
    %12 = tpu.memref_slice %arg2[%arg0, %3, %c0_i32_7] : memref<2x256x128xf32, #tpu.memory_space<any>> -> memref<1x16x128xf32, #tpu.memory_space<any>>
    %13 = tpu.memref_squeeze %12 : memref<1x16x128xf32, #tpu.memory_space<any>> -> memref<16x128xf32, #tpu.memory_space<any>>
    %c0_i32_8 = arith.constant 0 : i32
    %c0_i32_9 = arith.constant 0 : i32
    %14 = tpu.memref_slice %arg10[%c0_i32_8, %c0_i32_9] : memref<96x128xf32, #tpu.memory_space<vmem>> -> memref<16x128xf32, #tpu.memory_space<vmem>>
    %15 = tpu.memref_slice %arg11[%c1_i32_6] : memref<3x!tpu.dma_semaphore, #tpu.memory_space<semaphore_mem>> -> memref<1x!tpu.dma_semaphore, #tpu.memory_space<semaphore_mem>>
    %16 = tpu.memref_squeeze %15 : memref<1x!tpu.dma_semaphore, #tpu.memory_space<semaphore_mem>> -> memref<!tpu.dma_semaphore, #tpu.memory_space<semaphore_mem>>
    tpu.enqueue_dma source(%13 : memref<16x128xf32, #tpu.memory_space<any>>) target(%14 : memref<16x128xf32, #tpu.memory_space<vmem>>) target_semaphore(%16 : memref<!tpu.dma_semaphore, #tpu.memory_space<semaphore_mem>>)
    %c2_i32 = arith.constant 2 : i32
    %c0_i32_10 = arith.constant 0 : i32
    %17 = tpu.memref_slice %arg2[%arg0, %6, %c0_i32_10] : memref<2x256x128xf32, #tpu.memory_space<any>> -> memref<1x16x128xf32, #tpu.memory_space<any>>
    %18 = tpu.memref_squeeze %17 : memref<1x16x128xf32, #tpu.memory_space<any>> -> memref<16x128xf32, #tpu.memory_space<any>>
    %c80_i32 = arith.constant 80 : i32
    %c0_i32_11 = arith.constant 0 : i32
    %19 = tpu.memref_slice %arg10[%c80_i32, %c0_i32_11] : memref<96x128xf32, #tpu.memory_space<vmem>> -> memref<16x128xf32, #tpu.memory_space<vmem>>
    %20 = tpu.memref_slice %arg11[%c2_i32] : memref<3x!tpu.dma_semaphore, #tpu.memory_space<semaphore_mem>> -> memref<1x!tpu.dma_semaphore, #tpu.memory_space<semaphore_mem>>
    %21 = tpu.memref_squeeze %20 : memref<1x!tpu.dma_semaphore, #tpu.memory_space<semaphore_mem>> -> memref<!tpu.dma_semaphore, #tpu.memory_space<semaphore_mem>>
    tpu.enqueue_dma source(%18 : memref<16x128xf32, #tpu.memory_space<any>>) target(%19 : memref<16x128xf32, #tpu.memory_space<vmem>>) target_semaphore(%21 : memref<!tpu.dma_semaphore, #tpu.memory_space<semaphore_mem>>)
    %c1_i32_12 = arith.constant 1 : i32
    %c0_i32_13 = arith.constant 0 : i32
    %22 = tpu.memref_slice %arg2[%arg0, %3, %c0_i32_13] : memref<2x256x128xf32, #tpu.memory_space<any>> -> memref<1x16x128xf32, #tpu.memory_space<any>>
    %23 = tpu.memref_squeeze %22 : memref<1x16x128xf32, #tpu.memory_space<any>> -> memref<16x128xf32, #tpu.memory_space<any>>
    %c0_i32_14 = arith.constant 0 : i32
    %c0_i32_15 = arith.constant 0 : i32
    %24 = tpu.memref_slice %arg10[%c0_i32_14, %c0_i32_15] : memref<96x128xf32, #tpu.memory_space<vmem>> -> memref<16x128xf32, #tpu.memory_space<vmem>>
    %25 = tpu.memref_slice %arg11[%c1_i32_12] : memref<3x!tpu.dma_semaphore, #tpu.memory_space<semaphore_mem>> -> memref<1x!tpu.dma_semaphore, #tpu.memory_space<semaphore_mem>>
    %26 = tpu.memref_squeeze %25 : memref<1x!tpu.dma_semaphore, #tpu.memory_space<semaphore_mem>> -> memref<!tpu.dma_semaphore, #tpu.memory_space<semaphore_mem>>
    tpu.wait_dma2 semaphore(%26 : memref<!tpu.dma_semaphore, #tpu.memory_space<semaphore_mem>>) src(%23 : memref<16x128xf32, #tpu.memory_space<any>>) dst(%24 : memref<16x128xf32, #tpu.memory_space<vmem>>)
    %c2_i32_16 = arith.constant 2 : i32
    %c0_i32_17 = arith.constant 0 : i32
    %27 = tpu.memref_slice %arg2[%arg0, %6, %c0_i32_17] : memref<2x256x128xf32, #tpu.memory_space<any>> -> memref<1x16x128xf32, #tpu.memory_space<any>>
    %28 = tpu.memref_squeeze %27 : memref<1x16x128xf32, #tpu.memory_space<any>> -> memref<16x128xf32, #tpu.memory_space<any>>
    %c80_i32_18 = arith.constant 80 : i32
    %c0_i32_19 = arith.constant 0 : i32
    %29 = tpu.memref_slice %arg10[%c80_i32_18, %c0_i32_19] : memref<96x128xf32, #tpu.memory_space<vmem>> -> memref<16x128xf32, #tpu.memory_space<vmem>>
    %30 = tpu.memref_slice %arg11[%c2_i32_16] : memref<3x!tpu.dma_semaphore, #tpu.memory_space<semaphore_mem>> -> memref<1x!tpu.dma_semaphore, #tpu.memory_space<semaphore_mem>>
    %31 = tpu.memref_squeeze %30 : memref<1x!tpu.dma_semaphore, #tpu.memory_space<semaphore_mem>> -> memref<!tpu.dma_semaphore, #tpu.memory_space<semaphore_mem>>
    tpu.wait_dma2 semaphore(%31 : memref<!tpu.dma_semaphore, #tpu.memory_space<semaphore_mem>>) src(%28 : memref<16x128xf32, #tpu.memory_space<any>>) dst(%29 : memref<16x128xf32, #tpu.memory_space<vmem>>)
    %c0_i32_20 = arith.constant 0 : i32
    %c0_i32_21 = arith.constant 0 : i32
    %32 = tpu.memref_slice %arg2[%arg0, %0, %c0_i32_21] : memref<2x256x128xf32, #tpu.memory_space<any>> -> memref<1x64x128xf32, #tpu.memory_space<any>>
    %33 = tpu.memref_squeeze %32 : memref<1x64x128xf32, #tpu.memory_space<any>> -> memref<64x128xf32, #tpu.memory_space<any>>
    %c16_i32_22 = arith.constant 16 : i32
    %c0_i32_23 = arith.constant 0 : i32
    %34 = tpu.memref_slice %arg10[%c16_i32_22, %c0_i32_23] : memref<96x128xf32, #tpu.memory_space<vmem>> -> memref<64x128xf32, #tpu.memory_space<vmem>>
    %35 = tpu.memref_slice %arg11[%c0_i32_20] : memref<3x!tpu.dma_semaphore, #tpu.memory_space<semaphore_mem>> -> memref<1x!tpu.dma_semaphore, #tpu.memory_space<semaphore_mem>>
    %36 = tpu.memref_squeeze %35 : memref<1x!tpu.dma_semaphore, #tpu.memory_space<semaphore_mem>> -> memref<!tpu.dma_semaphore, #tpu.memory_space<semaphore_mem>>
    tpu.wait_dma2 semaphore(%36 : memref<!tpu.dma_semaphore, #tpu.memory_space<semaphore_mem>>) src(%33 : memref<64x128xf32, #tpu.memory_space<any>>) dst(%34 : memref<64x128xf32, #tpu.memory_space<vmem>>)
    %c0 = arith.constant 0 : index
    %c0_24 = arith.constant 0 : index
    %37 = vector.load %arg10[%c0, %c0_24] : memref<96x128xf32, #tpu.memory_space<vmem>>, vector<96x128xf32>
    %38 = arith.truncf %37 : vector<96x128xf32> to vector<96x128xbf16>
    %c0_25 = arith.constant 0 : index
    %c0_26 = arith.constant 0 : index
    %39 = vector.load %arg3[%c0_25, %c0_26] : memref<128x128xbf16, #tpu.memory_space<vmem>>, vector<128x128xbf16>
    %cst = arith.constant dense<0.000000e+00> : vector<96x128xf32>
    %40 = tpu.matmul %38, %39, %cst {dimension_numbers = #tpu.dot_dimension_numbers<[1], [0], [0], [1], [0, 0, 1, 1], [], []>} : vector<96x128xbf16>, vector<128x128xbf16>, vector<96x128xf32> -> vector<96x128xf32>
    %c0_27 = arith.constant 0 : index
    %c0_28 = arith.constant 0 : index
    %41 = vector.load %arg4[%c0_27, %c0_28] : memref<1x128xf32, #tpu.memory_space<vmem>>, vector<1x128xf32>
    %42 = vector.broadcast %41 : vector<1x128xf32> to vector<96x128xf32>
    %43 = arith.addf %40, %42 : vector<96x128xf32>
    %cst_29 = arith.constant 0.000000e+00 : f32
    %44 = vector.broadcast %cst_29 : f32 to vector<96x128xf32>
    %45 = arith.maximumf %43, %44 : vector<96x128xf32>
    %46 = tpu.iota {dimensions = array<i32: 0>} : vector<96x1xi32>
    %c16_i32_30 = arith.constant 16 : i32
    %47 = vector.broadcast %c16_i32_30 : i32 to vector<96x1xi32>
    %48 = arith.cmpi slt, %46, %47 : vector<96x1xi32>
    %c0_i32_31 = arith.constant 0 : i32
    %49 = arith.cmpi eq, %arg1, %c0_i32_31 : i32
    %50 = vector.broadcast %49 : i1 to vector<96x1xi1>
    %51 = arith.andi %48, %50 : vector<96x1xi1>
    %c80_i32_32 = arith.constant 80 : i32
    %52 = vector.broadcast %c80_i32_32 : i32 to vector<96x1xi32>
    %53 = arith.cmpi sge, %46, %52 : vector<96x1xi32>
    %c3_i32 = arith.constant 3 : i32
    %54 = arith.cmpi eq, %arg1, %c3_i32 : i32
    %55 = vector.broadcast %54 : i1 to vector<96x1xi1>
    %56 = arith.andi %53, %55 : vector<96x1xi1>
    %57 = arith.ori %51, %56 : vector<96x1xi1>
    %cst_33 = arith.constant 0.000000e+00 : f32
    %58 = vector.shape_cast %57 : vector<96x1xi1> to vector<96x1xi1>
    %59 = vector.broadcast %58 : vector<96x1xi1> to vector<96x128xi1>
    %60 = vector.broadcast %cst_33 : f32 to vector<96x128xf32>
    %61 = arith.select %59, %60, %45 : vector<96x128xi1>, vector<96x128xf32>
    %c16_i32_34 = arith.constant 16 : i32
    %c0_i32_35 = arith.constant 0 : i32
    %62 = arith.cmpi eq, %c16_i32_34, %c0_i32_35 : i32
    %c1_i32_36 = arith.constant 1 : i32
    %63 = arith.select %62, %c1_i32_36, %c16_i32_34 : i32
    %64 = vector.broadcast %63 : i32 to vector<96x1xi32>
    %65 = arith.remsi %46, %64 : vector<96x1xi32>
    %c0_i32_37 = arith.constant 0 : i32
    %66 = vector.broadcast %c0_i32_37 : i32 to vector<96x1xi32>
    %67 = arith.cmpi ne, %65, %66 : vector<96x1xi32>
    %c0_i32_38 = arith.constant 0 : i32
    %68 = vector.broadcast %c0_i32_38 : i32 to vector<96x1xi32>
    %69 = arith.cmpi slt, %65, %68 : vector<96x1xi32>
    %c0_i32_39 = arith.constant 0 : i32
    %70 = arith.cmpi slt, %63, %c0_i32_39 : i32
    %71 = vector.broadcast %70 : i1 to vector<96x1xi1>
    %72 = vector.broadcast %71 : vector<96x1xi1> to vector<96x1xi1>
    %73 = arith.xori %69, %72 : vector<96x1xi1>
    %74 = arith.andi %73, %67 : vector<96x1xi1>
    %75 = vector.broadcast %63 : i32 to vector<96x1xi32>
    %76 = arith.addi %65, %75 : vector<96x1xi32>
    %77 = arith.select %74, %76, %65 : vector<96x1xi1>, vector<96x1xi32>
    %c15_i32 = arith.constant 15 : i32
    %78 = vector.broadcast %c15_i32 : i32 to vector<96x1xi32>
    %79 = arith.cmpi eq, %77, %78 : vector<96x1xi32>
    %cst_40 = arith.constant 0.000000e+00 : f32
    %80 = vector.shape_cast %79 : vector<96x1xi1> to vector<96x1xi1>
    %81 = vector.broadcast %80 : vector<96x1xi1> to vector<96x128xi1>
    %82 = vector.broadcast %cst_40 : f32 to vector<96x128xf32>
    %83 = arith.select %81, %82, %61 : vector<96x128xi1>, vector<96x128xf32>
    %c0_i32_41 = arith.constant 0 : i32
    %84 = vector.broadcast %c0_i32_41 : i32 to vector<96x1xi32>
    %85 = arith.cmpi eq, %77, %84 : vector<96x1xi32>
    %cst_42 = arith.constant 0.000000e+00 : f32
    %86 = vector.shape_cast %85 : vector<96x1xi1> to vector<96x1xi1>
    %87 = vector.broadcast %86 : vector<96x1xi1> to vector<96x128xi1>
    %88 = vector.broadcast %cst_42 : f32 to vector<96x128xf32>
    %89 = arith.select %87, %88, %61 : vector<96x128xi1>, vector<96x128xf32>
    %c1_i32_43 = arith.constant 1 : i32
    %90 = tpu.dynamic_rotate %83 by %c1_i32_43 dim 0 : vector<96x128xf32>, i32 -> vector<96x128xf32>
    %91 = vector.extract_strided_slice %90 {offsets = [0, 0], sizes = [64, 128], strides = [1, 1]} : vector<96x128xf32> to vector<64x128xf32>
    %92 = arith.truncf %91 : vector<64x128xf32> to vector<64x128xbf16>
    %93 = vector.extract_strided_slice %61 {offsets = [0, 0], sizes = [64, 128], strides = [1, 1]} : vector<96x128xf32> to vector<64x128xf32>
    %94 = arith.truncf %93 : vector<64x128xf32> to vector<64x128xbf16>
    %c95_i32 = arith.constant 95 : i32
    %95 = tpu.dynamic_rotate %89 by %c95_i32 dim 0 : vector<96x128xf32>, i32 -> vector<96x128xf32>
    %96 = vector.extract_strided_slice %95 {offsets = [0, 0], sizes = [64, 128], strides = [1, 1]} : vector<96x128xf32> to vector<64x128xf32>
    %97 = arith.truncf %96 : vector<64x128xf32> to vector<64x128xbf16>
    %c81_i32 = arith.constant 81 : i32
    %98 = tpu.dynamic_rotate %83 by %c81_i32 dim 0 : vector<96x128xf32>, i32 -> vector<96x128xf32>
    %99 = vector.extract_strided_slice %98 {offsets = [0, 0], sizes = [64, 128], strides = [1, 1]} : vector<96x128xf32> to vector<64x128xf32>
    %100 = arith.truncf %99 : vector<64x128xf32> to vector<64x128xbf16>
    %c80_i32_44 = arith.constant 80 : i32
    %101 = tpu.dynamic_rotate %61 by %c80_i32_44 dim 0 : vector<96x128xf32>, i32 -> vector<96x128xf32>
    %102 = vector.extract_strided_slice %101 {offsets = [0, 0], sizes = [64, 128], strides = [1, 1]} : vector<96x128xf32> to vector<64x128xf32>
    %103 = arith.truncf %102 : vector<64x128xf32> to vector<64x128xbf16>
    %c79_i32 = arith.constant 79 : i32
    %104 = tpu.dynamic_rotate %89 by %c79_i32 dim 0 : vector<96x128xf32>, i32 -> vector<96x128xf32>
    %105 = vector.extract_strided_slice %104 {offsets = [0, 0], sizes = [64, 128], strides = [1, 1]} : vector<96x128xf32> to vector<64x128xf32>
    %106 = arith.truncf %105 : vector<64x128xf32> to vector<64x128xbf16>
    %c65_i32 = arith.constant 65 : i32
    %107 = tpu.dynamic_rotate %83 by %c65_i32 dim 0 : vector<96x128xf32>, i32 -> vector<96x128xf32>
    %108 = vector.extract_strided_slice %107 {offsets = [0, 0], sizes = [64, 128], strides = [1, 1]} : vector<96x128xf32> to vector<64x128xf32>
    %109 = arith.truncf %108 : vector<64x128xf32> to vector<64x128xbf16>
    %c64_i32_45 = arith.constant 64 : i32
    %110 = tpu.dynamic_rotate %61 by %c64_i32_45 dim 0 : vector<96x128xf32>, i32 -> vector<96x128xf32>
    %111 = vector.extract_strided_slice %110 {offsets = [0, 0], sizes = [64, 128], strides = [1, 1]} : vector<96x128xf32> to vector<64x128xf32>
    %112 = arith.truncf %111 : vector<64x128xf32> to vector<64x128xbf16>
    %c63_i32 = arith.constant 63 : i32
    %113 = tpu.dynamic_rotate %89 by %c63_i32 dim 0 : vector<96x128xf32>, i32 -> vector<96x128xf32>
    %114 = vector.extract_strided_slice %113 {offsets = [0, 0], sizes = [64, 128], strides = [1, 1]} : vector<96x128xf32> to vector<64x128xf32>
    %115 = arith.truncf %114 : vector<64x128xf32> to vector<64x128xbf16>
    %116 = tpu.concatenate %92, %94, %97, %100, %103, %106, %109, %112, %115 in 1 : vector<64x128xbf16>, vector<64x128xbf16>, vector<64x128xbf16>, vector<64x128xbf16>, vector<64x128xbf16>, vector<64x128xbf16>, vector<64x128xbf16>, vector<64x128xbf16>, vector<64x128xbf16> -> vector<64x1152xbf16>
    %c0_46 = arith.constant 0 : index
    %c0_47 = arith.constant 0 : index
    %117 = vector.load %arg5[%c0_46, %c0_47] : memref<1152x128xbf16, #tpu.memory_space<vmem>>, vector<1152x128xbf16>
    %cst_48 = arith.constant dense<0.000000e+00> : vector<64x128xf32>
    %118 = tpu.matmul %116, %117, %cst_48 {dimension_numbers = #tpu.dot_dimension_numbers<[1], [0], [0], [1], [0, 0, 1, 1], [], []>} : vector<64x1152xbf16>, vector<1152x128xbf16>, vector<64x128xf32> -> vector<64x128xf32>
    %c0_49 = arith.constant 0 : index
    %c0_50 = arith.constant 0 : index
    %119 = vector.load %arg6[%c0_49, %c0_50] : memref<1x128xf32, #tpu.memory_space<vmem>>, vector<1x128xf32>
    %120 = vector.broadcast %119 : vector<1x128xf32> to vector<64x128xf32>
    %121 = arith.addf %118, %120 : vector<64x128xf32>
    %cst_51 = arith.constant 0.000000e+00 : f32
    %122 = vector.broadcast %cst_51 : f32 to vector<64x128xf32>
    %123 = arith.maximumf %121, %122 : vector<64x128xf32>
    %124 = arith.truncf %123 : vector<64x128xf32> to vector<64x128xbf16>
    %c0_52 = arith.constant 0 : index
    %c0_53 = arith.constant 0 : index
    %125 = vector.load %arg7[%c0_52, %c0_53] : memref<128x128xbf16, #tpu.memory_space<vmem>>, vector<128x128xbf16>
    %cst_54 = arith.constant dense<0.000000e+00> : vector<64x128xf32>
    %126 = tpu.matmul %124, %125, %cst_54 {dimension_numbers = #tpu.dot_dimension_numbers<[1], [0], [0], [1], [0, 0, 1, 1], [], []>} : vector<64x128xbf16>, vector<128x128xbf16>, vector<64x128xf32> -> vector<64x128xf32>
    %c0_55 = arith.constant 0 : index
    %c0_56 = arith.constant 0 : index
    %127 = vector.load %arg8[%c0_55, %c0_56] : memref<1x128xf32, #tpu.memory_space<vmem>>, vector<1x128xf32>
    %128 = vector.broadcast %127 : vector<1x128xf32> to vector<64x128xf32>
    %129 = arith.addf %126, %128 : vector<64x128xf32>
    %c16 = arith.constant 16 : index
    %c0_57 = arith.constant 0 : index
    %130 = vector.load %arg10[%c16, %c0_57] : memref<96x128xf32, #tpu.memory_space<vmem>>, vector<64x128xf32>
    %131 = arith.addf %129, %130 : vector<64x128xf32>
    %cst_58 = arith.constant 0.000000e+00 : f32
    %132 = vector.broadcast %cst_58 : f32 to vector<64x128xf32>
    %133 = arith.maximumf %131, %132 : vector<64x128xf32>
    %c0_59 = arith.constant 0 : index
    %c0_60 = arith.constant 0 : index
    %c0_61 = arith.constant 0 : index
    %134 = vector.load %arg9[%c0_59, %c0_60, %c0_61] : memref<1x64x128xf32, #tpu.memory_space<vmem>>, vector<1x64x128xf32>
    %135 = vector.shape_cast %134 : vector<1x64x128xf32> to vector<64x128xf32>
    %136 = vector.shape_cast %133 : vector<64x128xf32> to vector<1x64x128xf32>
    tpu.vector_store %arg9[%c0_59, %c0_60, %c0_61], %136 {strides = array<i32>} : memref<1x64x128xf32, #tpu.memory_space<vmem>>, vector<1x64x128xf32>,
    return
  }
  func.func @transform_1(%arg0: i32, %arg1: i32) -> (i32, i32) {
    %c0_i32 = arith.constant 0 : i32
    %c0_i32_0 = arith.constant 0 : i32
    %c0_i32_1 = arith.constant 0 : i32
    return %c0_i32, %c0_i32_0 : i32, i32
  }
  func.func @transform_2(%arg0: i32, %arg1: i32) -> (i32, i32) {
    %c0_i32 = arith.constant 0 : i32
    %c0_i32_0 = arith.constant 0 : i32
    %c0_i32_1 = arith.constant 0 : i32
    return %c0_i32, %c0_i32_0 : i32, i32
  }
  func.func @transform_3(%arg0: i32, %arg1: i32) -> (i32, i32) {
    %c0_i32 = arith.constant 0 : i32
    %c0_i32_0 = arith.constant 0 : i32
    %c0_i32_1 = arith.constant 0 : i32
    return %c0_i32, %c0_i32_0 : i32, i32
  }
  func.func @transform_4(%arg0: i32, %arg1: i32) -> (i32, i32) {
    %c0_i32 = arith.constant 0 : i32
    %c0_i32_0 = arith.constant 0 : i32
    %c0_i32_1 = arith.constant 0 : i32
    return %c0_i32, %c0_i32_0 : i32, i32
  }
  func.func @transform_5(%arg0: i32, %arg1: i32) -> (i32, i32) {
    %c0_i32 = arith.constant 0 : i32
    %c0_i32_0 = arith.constant 0 : i32
    %c0_i32_1 = arith.constant 0 : i32
    return %c0_i32, %c0_i32_0 : i32, i32
  }
  func.func @transform_6(%arg0: i32, %arg1: i32) -> (i32, i32) {
    %c0_i32 = arith.constant 0 : i32
    %c0_i32_0 = arith.constant 0 : i32
    %c0_i32_1 = arith.constant 0 : i32
    return %c0_i32, %c0_i32_0 : i32, i32
  }
  func.func @transform_7(%arg0: i32, %arg1: i32) -> (i32, i32, i32) {
    %c0_i32 = arith.constant 0 : i32
    %c0_i32_0 = arith.constant 0 : i32
    return %arg0, %arg1, %c0_i32 : i32, i32, i32
  }
}

</mosaic_0001>

<llo_original>
// kernel: tpu_custom_call.1
$region0: #{tpu_custom_call.1}
  #allocation0 [shape = 'u32[]', space=smem, size = 0x4, offset = 0x4, fixed_abs, tag = 'smem constant byte address 0x4 - core index']
  #allocation1 [shape = 'u32[144,128]{1,0:T(1,128)}', space=vmem, size = 0x12000, scoped, tag = 'internal scratch']
  #allocation2 [shape = 'f32[96,128]{1,0:T(8,128)}', space=vmem, size = 0xc000, scoped, tag = 'scratch operand']
  #allocation3 [shape = 's32[3]{0}', space=sflag, size = 0xc, scoped, tag = 'scratch operand']
  #allocation11 [shape = 's32[]', space=sflag, size = 0x4, offset = 0, fixed_abs, tag = 'sflag constant byte address 0x0 - dummy sync flag']
  #allocation12 [shape = 's32[]', space=sflag, size = 0x4, offset = 0, fixed_abs, tag = 'sflag constant byte address 0x0 - dummy sync flag']
  #allocation13 [shape = 'u32[]', space=smem, size = 0x4, offset = 0x44, fixed_abs, tag = 'smem constant byte address 0x44 - assertion arg 0']
  #allocation14 [shape = 'u32[]', space=smem, size = 0x4, offset = 0x48, fixed_abs, tag = 'smem constant byte address 0x48 - assertion arg 1']
  #allocation15 [shape = 's32[]', space=sflag, size = 0x4, offset = 0, fixed_abs, tag = 'sflag constant byte address 0x0 - dummy sync flag']
  #allocation16 [shape = 's32[]', space=sflag, size = 0x4, offset = 0, fixed_abs, tag = 'sflag constant byte address 0x0 - dummy sync flag']
  #allocation17 [shape = 's32[]', space=sflag, size = 0x4, offset = 0, fixed_abs, tag = 'sflag constant byte address 0x0 - dummy sync flag']
  #allocation18 [shape = 's32[]', space=sflag, size = 0x4, offset = 0, fixed_abs, tag = 'sflag constant byte address 0x0 - dummy sync flag']
  %s0 = inlined_call_operand.hbm [shape: f32[2,256,128], index: 0, kind: input, shape index: {}]
  %s1 = inlined_call_operand.hbm [shape: bf16[128,128], index: 1, kind: input, shape index: {}]
  %s2 = inlined_call_operand.vmem [shape: f32[1,128], index: 2, kind: input, shape index: {}]
  %s3 = inlined_call_operand.hbm [shape: bf16[1152,128], index: 3, kind: input, shape index: {}]
  %s4 = inlined_call_operand.vmem [shape: f32[1,128], index: 4, kind: input, shape index: {}]
  %s5 = inlined_call_operand.hbm [shape: bf16[128,128], index: 5, kind: input, shape index: {}]
  %s6 = inlined_call_operand.vmem [shape: f32[1,128], index: 6, kind: input, shape index: {}]
  %s7 = inlined_call_operand.hbm [shape: f32[2,256,128], index: 7, kind: output, shape index: {}]
  %s8 = sld [smem:[#allocation0]]
  $region81: #{tpu_custom_call.1} parent=0
    _
  %s10 = ssub.s32 1, %s8
  %s11 = scalar_select 0, %s10, %s8
  $region1: #{tpu_custom_call.1} parent=0
    #allocation4 [shape = 'u8[32768]{0}', space=vmem, size = 0x8000, scoped, tag = 'input window, operand 1, single buffered']
    #allocation5 [shape = 's32[2]{0}', space=sflag, size = 0x8, scoped, tag = 'scoped memory for tpu_custom_call.1']
    #allocation6 [shape = 's32[2]{0}', space=sflag, size = 0x8, scoped, tag = 'scoped memory for tpu_custom_call.1']
    #allocation7 [shape = 'u8[294912]{0}', space=vmem, size = 0x48000, scoped, tag = 'input window, operand 3, single buffered']
    #allocation8 [shape = 's32[1]{0}', space=sflag, size = 0x4, scoped, tag = 'scoped memory for tpu_custom_call.1']
    #allocation9 [shape = 'u8[32768]{0}', space=vmem, size = 0x8000, scoped, tag = 'input window, operand 5, single buffered']
    #allocation10 [shape = 'u8[65536]{0}', space=vmem, size = 0x10000, scoped, tag = 'output window, operand 0']
    %12 = vsyncpa [#allocation5], 0
    %13 = vsyncpa [#allocation8], 0
    %14 = vsyncpa [#allocation6], 0
    %s15 = scalar_lea.sflag [#allocation6], 1
    %16 = vsyncpa %s15, 0
    loop: start=0, step=1, limit=10
    $region2: #{tpu_custom_call.1} parent=1 // loop_pre_header
      _
    $region3: #{tpu_custom_call.1} parent=1 // loop_header
      %s18 = sphi 0, %s22
      %p19 = scmp.ge.s32.totalorder %s18, 10
      %s25 = sphi 0, %s37
      %s26 = sphi 0, %s33
      %s27 = sphi 0, %s25
      %s28 = sphi 0, %s26
      %s29 = sphi 0, %s27
      %s30 = sphi 0, %s28
      %s38 = sphi 0, %s38
      %s40 = sphi 0, %s38
      %s41 = sphi 0, %s40
      %s55 = sphi 0, %s41
      %s59 = sphi 0, %s59
      %s61 = sphi 0, %s59
      %s62 = sphi 0, %s61
      %s76 = sphi 0, %s62
      %s80 = sphi 0, %s80
      %s82 = sphi 0, %s80
      %s83 = sphi 0, %s82
      %s97 = sphi 0, %s83
      %s101 = sphi 0, %s101
      %s103 = sphi 0, %s101
      %s104 = sphi 0, %s103
      %s118 = sphi 0, %s104
      %s122 = sphi 0, %s122
      %s124 = sphi 0, %s122
      %s125 = sphi 0, %s124
      %s139 = sphi 0, %s125
      %s143 = sphi 0, %s143
      %s145 = sphi 0, %s143
      %s146 = sphi 0, %s145
      %s160 = sphi 0, %s146
      %s168 = sphi 0, %s170
      %s171 = sphi 0, %s168
      %s172 = sphi 0, %s171
      %s188 = sphi 0, %s172
    $region4: #{tpu_custom_call.1} parent=1 // loop_header_branch
      %21 = sbr.rel (%p19) target = $region8
    $region5: #{tpu_custom_call.1} parent=1 // loop_body
      %s23 = ssub.s32 %s18, 1
      %s24 = ssub.s32 %s18, 2
      %s31 = sadd.s32 1, %s26
      %p32 = scmp.ge.s32.totalorder %s31, 4
      %s33 = scalar_select %p32, 0, %s31
      %s34 = sadd.s32 1, %s25
      %s35 = scalar_select %p32, %s34, %s25
      %p36 = scmp.ge.s32.totalorder %s35, 2
      %s37 = scalar_select %p36, 0, %s35
      %s39 = sadd.s32 %s38, 1
      %p42 = scmp.eq.s32.totalorder %s18, 7
      %p43 = scmp.ne.s32.totalorder %s38, %s40
      %p44 = scmp.eq.s32.totalorder %s18, 0
      %p45 = por %p43, %p44
      %p46 = scmp.ne.s32.totalorder %s38, %s40
      %p47 = scmp.eq.s32.totalorder %s23, 7
      %p48 = por %p46, %p47
      %p49 = scmp.ne.s32.totalorder %s40, %s41
      %p50 = scmp.eq.s32.totalorder %s23, 0
      %p51 = por %p49, %p50
      %p52 = scmp.ne.s32.totalorder %s40, %s41
      %p53 = scmp.eq.s32.totalorder %s24, 7
      %p54 = por %p52, %p53
      %p56 = scmp.ne.s32.totalorder %s41, %s55
      %p57 = scmp.eq.s32.totalorder %s24, 0
      %p58 = por %p56, %p57
      %s60 = sadd.s32 %s59, 1
      %p63 = scmp.eq.s32.totalorder %s18, 7
      %p64 = scmp.ne.s32.totalorder %s59, %s61
      %p65 = scmp.eq.s32.totalorder %s18, 0
      %p66 = por %p64, %p65
      %p67 = scmp.ne.s32.totalorder %s59, %s61
      %p68 = scmp.eq.s32.totalorder %s23, 7
      %p69 = por %p67, %p68
      %p70 = scmp.ne.s32.totalorder %s61, %s62
      %p71 = scmp.eq.s32.totalorder %s23, 0
      %p72 = por %p70, %p71
      %p73 = scmp.ne.s32.totalorder %s61, %s62
      %p74 = scmp.eq.s32.totalorder %s24, 7
      %p75 = por %p73, %p74
      %p77 = scmp.ne.s32.totalorder %s62, %s76
      %p78 = scmp.eq.s32.totalorder %s24, 0
      %p79 = por %p77, %p78
      %s81 = sadd.s32 %s80, 1
      %p84 = scmp.eq.s32.totalorder %s18, 7
      %p85 = scmp.ne.s32.totalorder %s80, %s82
      %p86 = scmp.eq.s32.totalorder %s18, 0
      %p87 = por %p85, %p86
      %p88 = scmp.ne.s32.totalorder %s80, %s82
      %p89 = scmp.eq.s32.totalorder %s23, 7
      %p90 = por %p88, %p89
      %p91 = scmp.ne.s32.totalorder %s82, %s83
      %p92 = scmp.eq.s32.totalorder %s23, 0
      %p93 = por %p91, %p92
      %p94 = scmp.ne.s32.totalorder %s82, %s83
      %p95 = scmp.eq.s32.totalorder %s24, 7
      %p96 = por %p94, %p95
      %p98 = scmp.ne.s32.totalorder %s83, %s97
      %p99 = scmp.eq.s32.totalorder %s24, 0
      %p100 = por %p98, %p99
      %s102 = sadd.s32 %s101, 1
      %p105 = scmp.eq.s32.totalorder %s18, 7
      %p106 = scmp.ne.s32.totalorder %s101, %s103
      %p107 = scmp.eq.s32.totalorder %s18, 0
      %p108 = por %p106, %p107
      %p109 = scmp.ne.s32.totalorder %s101, %s103
      %p110 = scmp.eq.s32.totalorder %s23, 7
      %p111 = por %p109, %p110
      %p112 = scmp.ne.s32.totalorder %s103, %s104
      %p113 = scmp.eq.s32.totalorder %s23, 0
      %p114 = por %p112, %p113
      %p115 = scmp.ne.s32.totalorder %s103, %s104
      %p116 = scmp.eq.s32.totalorder %s24, 7
      %p117 = por %p115, %p116
      %p119 = scmp.ne.s32.totalorder %s104, %s118
      %p120 = scmp.eq.s32.totalorder %s24, 0
      %p121 = por %p119, %p120
      %s123 = sadd.s32 %s122, 1
      %p126 = scmp.eq.s32.totalorder %s18, 7
      %p127 = scmp.ne.s32.totalorder %s122, %s124
      %p128 = scmp.eq.s32.totalorder %s18, 0
      %p129 = por %p127, %p128
      %p130 = scmp.ne.s32.totalorder %s122, %s124
      %p131 = scmp.eq.s32.totalorder %s23, 7
      %p132 = por %p130, %p131
      %p133 = scmp.ne.s32.totalorder %s124, %s125
      %p134 = scmp.eq.s32.totalorder %s23, 0
      %p135 = por %p133, %p134
      %p136 = scmp.ne.s32.totalorder %s124, %s125
      %p137 = scmp.eq.s32.totalorder %s24, 7
      %p138 = por %p136, %p137
      %p140 = scmp.ne.s32.totalorder %s125, %s139
      %p141 = scmp.eq.s32.totalorder %s24, 0
      %p142 = por %p140, %p141
      %s144 = sadd.s32 %s143, 1
      %p147 = scmp.eq.s32.totalorder %s18, 7
      %p148 = scmp.ne.s32.totalorder %s143, %s145
      %p149 = scmp.eq.s32.totalorder %s18, 0
      %p150 = por %p148, %p149
      %p151 = scmp.ne.s32.totalorder %s143, %s145
      %p152 = scmp.eq.s32.totalorder %s23, 7
      %p153 = por %p151, %p152
      %p154 = scmp.ne.s32.totalorder %s145, %s146
      %p155 = scmp.eq.s32.totalorder %s23, 0
      %p156 = por %p154, %p155
      %p157 = scmp.ne.s32.totalorder %s145, %s146
      %p158 = scmp.eq.s32.totalorder %s24, 7
      %p159 = por %p157, %p158
      %p161 = scmp.ne.s32.totalorder %s146, %s160
      %p162 = scmp.eq.s32.totalorder %s24, 0
      %p163 = por %p161, %p162
      %s164 = ssub.s32 %s25, %s37
      %s165 = ssub.s32 %s26, %s33
      %s166 = sor.u32 %s164, %s165
      %p167 = scmp.eq.s32.totalorder %s166, 0
      %s169 = sadd.s32 %s168, 1
      %s170 = scalar_select %p167, %s168, %s169
      %p173 = pneg %p167
      %p174 = scmp.eq.s32.totalorder %s18, 7
      %p175 = por %p173, %p174
      %p176 = scmp.ne.s32.totalorder %s168, %s171
      %p177 = scmp.eq.s32.totalorder %s18, 0
      %p178 = por %p176, %p177
      %p179 = scmp.ne.s32.totalorder %s168, %s171
      %p180 = scmp.eq.s32.totalorder %s23, 7
      %p181 = por %p179, %p180
      %p182 = scmp.ne.s32.totalorder %s171, %s172
      %p183 = scmp.eq.s32.totalorder %s23, 0
      %p184 = por %p182, %p183
      %p185 = scmp.ne.s32.totalorder %s171, %s172
      %p186 = scmp.eq.s32.totalorder %s24, 7
      %p187 = por %p185, %p186
      %p189 = scmp.ne.s32.totalorder %s172, %s188
      %p190 = scmp.eq.s32.totalorder %s24, 0
      %p191 = por %p189, %p190
      %p192 = scmp.le.s32.totalorder 1, %s18
      %p193 = scmp.lt.s32.totalorder %s18, 9
      %p194 = pnand %p192, %p193
      %p195 = pneg %p194
      // Predicated region
      $region9: #{tpu_custom_call.1} parent=5 // pred_check
        _
      $region10: #{tpu_custom_call.1} parent=5 // pred_check_branch
        %197 = sbr.rel (%p194) target = $region12
      $region11: #{tpu_custom_call.1} parent=5 // pred_region
        %s198 = ssub.s32 %s18, 1
        // Predicated region
        $region13: #{tpu_custom_call.1} parent=11 // pred_check
          %p199 = pneg %p51
        $region14: #{tpu_custom_call.1} parent=11 // pred_check_branch
          %201 = sbr.rel (%p199) target = $region16
        $region15: #{tpu_custom_call.1} parent=11 // pred_region
          %s203 = ssub.s32 1024, 1024
          %204 = vsyncadd [#allocation5], %s203
          %s205 = sshll.u32 [#allocation4], 4
          %s206 = int_to_ptr.vmem [resolvable:$true] %s205
          %211 = dma.hbm_to_vmem [thread:$0]  %s1, 1024, %s206, [#allocation5], 64, 64, 4
        $region16: #{tpu_custom_call.1} parent=11 // pred_fallthru
          _
        // Predicated region
        $region17: #{tpu_custom_call.1} parent=11 // pred_check
          %p212 = pneg %p72
        $region18: #{tpu_custom_call.1} parent=11 // pred_check_branch
          %214 = sbr.rel (%p212) target = $region20
        $region19: #{tpu_custom_call.1} parent=11 // pred_region
          _
        $region20: #{tpu_custom_call.1} parent=11 // pred_fallthru
          _
        // Predicated region
        $region21: #{tpu_custom_call.1} parent=11 // pred_check
          %p215 = pneg %p93
        $region22: #{tpu_custom_call.1} parent=11 // pred_check_branch
          %217 = sbr.rel (%p215) target = $region24
        $region23: #{tpu_custom_call.1} parent=11 // pred_region
          %s219 = ssub.s32 9216, 9216
          %220 = vsyncadd [#allocation8], %s219
          %s221 = sshll.u32 [#allocation7], 4
          %s222 = int_to_ptr.vmem [resolvable:$true] %s221
          %227 = dma.hbm_to_vmem [thread:$0]  %s3, 9216, %s222, [#allocation8], 64, 64, 4
        $region24: #{tpu_custom_call.1} parent=11 // pred_fallthru
          _
        // Predicated region
        $region25: #{tpu_custom_call.1} parent=11 // pred_check
          %p228 = pneg %p114
        $region26: #{tpu_custom_call.1} parent=11 // pred_check_branch
          %230 = sbr.rel (%p228) target = $region28
        $region27: #{tpu_custom_call.1} parent=11 // pred_region
          _
        $region28: #{tpu_custom_call.1} parent=11 // pred_fallthru
          _
        // Predicated region
        $region29: #{tpu_custom_call.1} parent=11 // pred_check
          %p231 = pneg %p135
        $region30: #{tpu_custom_call.1} parent=11 // pred_check_branch
          %233 = sbr.rel (%p231) target = $region32
        $region31: #{tpu_custom_call.1} parent=11 // pred_region
          %s235 = ssub.s32 1024, 1024
          %236 = vsyncadd [#allocation8], %s235
          %s237 = sshll.u32 [#allocation9], 4
          %s238 = int_to_ptr.vmem [resolvable:$true] %s237
          %243 = dma.hbm_to_vmem [thread:$0]  %s5, 1024, %s238, [#allocation8], 64, 64, 4
        $region32: #{tpu_custom_call.1} parent=11 // pred_fallthru
          _
        // Predicated region
        $region33: #{tpu_custom_call.1} parent=11 // pred_check
          %p244 = pneg %p156
        $region34: #{tpu_custom_call.1} parent=11 // pred_check_branch
          %246 = sbr.rel (%p244) target = $region36
        $region35: #{tpu_custom_call.1} parent=11 // pred_region
          _
        $region36: #{tpu_custom_call.1} parent=11 // pred_fallthru
          _
      $region12: #{tpu_custom_call.1} parent=5 // pred_fallthru
        _
      %p247 = scmp.lt.s32.totalorder %s18, 8
      // Predicated region
      $region37: #{tpu_custom_call.1} parent=5 // pred_check
        %p248 = pneg %p247
      $region38: #{tpu_custom_call.1} parent=5 // pred_check_branch
        %250 = sbr.rel (%p248) target = $region40
      $region39: #{tpu_custom_call.1} parent=5 // pred_region
        _
      $region40: #{tpu_custom_call.1} parent=5 // pred_fallthru
        _
      %p251 = scmp.le.s32.totalorder 1, %s18
      %p252 = scmp.lt.s32.totalorder %s18, 9
      %p253 = pnand %p251, %p252
      %p254 = pneg %p253
      // Predicated region
      $region41: #{tpu_custom_call.1} parent=5 // pred_check
        _
      $region42: #{tpu_custom_call.1} parent=5 // pred_check_branch
        %256 = sbr.rel (%p253) target = $region44
      $region43: #{tpu_custom_call.1} parent=5 // pred_region
        %s257 = ssub.s32 %s18, 1
        // Predicated region
        $region45: #{tpu_custom_call.1} parent=43 // pred_check
          %p258 = pneg %p51
        $region46: #{tpu_custom_call.1} parent=43 // pred_check_branch
          %260 = sbr.rel (%p258) target = $region48
        $region47: #{tpu_custom_call.1} parent=43 // pred_region
          %261 = dma.done [#allocation5], 1024
        $region48: #{tpu_custom_call.1} parent=43 // pred_fallthru
          _
        // Predicated region
        $region49: #{tpu_custom_call.1} parent=43 // pred_check
          %p262 = pneg %p93
        $region50: #{tpu_custom_call.1} parent=43 // pred_check_branch
          %264 = sbr.rel (%p262) target = $region52
        $region51: #{tpu_custom_call.1} parent=43 // pred_region
          %265 = dma.done [#allocation8], 9216
        $region52: #{tpu_custom_call.1} parent=43 // pred_fallthru
          _
        // Predicated region
        $region53: #{tpu_custom_call.1} parent=43 // pred_check
          %p266 = pneg %p135
        $region54: #{tpu_custom_call.1} parent=43 // pred_check_branch
          %268 = sbr.rel (%p266) target = $region56
        $region55: #{tpu_custom_call.1} parent=43 // pred_region
          %269 = dma.done [#allocation8], 1024
        $region56: #{tpu_custom_call.1} parent=43 // pred_fallthru
          _
        %p270 = pneg %p51
        %p271 = pneg %p48
        %p272 = pneg %p72
        %p273 = pneg %p69
        %p274 = pneg %p93
        %p275 = pneg %p90
        %p276 = pneg %p114
        %p277 = pneg %p111
        %p278 = pneg %p135
        %p279 = pneg %p132
        %p280 = pneg %p156
        %p281 = pneg %p153
        %p282 = pneg %p184
        %p283 = pneg %p181
        %s284 = sand.u32 %s171, 1
        %s285 = scalar_lea.sflag [#allocation6], %s284
        %s286 = sand.u32 %s171, 1
        %s287 = smul.addr %s286, 64
        %s288 = scalar_lea.vmem [#allocation10], %s287
        %s289 = smul.u32 8, %s28
        %s291 = smul.u32 %s28, 64
        %s292 = ssub.s32 %s291, 16
        %p293 = scmp.gt.s32.totalorder %s292, 0
        %s294 = scalar_select %p293, %s292, 0
        %s295 = sadd.s32 %s28, 1
        %s296 = smul.u32 %s295, 64
        %p297 = scmp.lt.s32.totalorder %s296, 240
        %s298 = scalar_select %p297, %s296, 240
        %s299 = smul.u32 %s27, 256
        %s300 = sadd.s32 %s291, %s299
        %s301 = smul.addr %s300, 16
        %s302 = scalar_lea.hbm %s0, %s301
        %s303 = scalar_lea.vmem [#allocation2], 16
        // Predicated region
        $region57: #{tpu_custom_call.1} parent=43 // pred_check
          _
        $region58: #{tpu_custom_call.1} parent=43 // pred_check_branch
          %305 = sbr.rel target = $region60
        $region59: #{tpu_custom_call.1} parent=43 // pred_region
          %306 = sst [smem:[#allocation13]] [#allocation12]
          %307 = sst [smem:[#allocation14]] [#allocation11]
        $region60: #{tpu_custom_call.1} parent=43 // pred_fallthru
          _
        %309 = shalt.err (0)
        %s311 = sshll.u32 %s303, 4
        %s312 = int_to_ptr.vmem [resolvable:$true] %s311
        %314 = dma.hbm_to_vmem [thread:$0]  %s302, 1024, %s312, [#allocation3]
        %s315 = sadd.s32 %s294, %s299
        %s316 = smul.addr %s315, 16
        %s317 = scalar_lea.hbm %s0, %s316
        %s318 = scalar_lea.sflag [#allocation3], 1
        // Predicated region
        $region61: #{tpu_custom_call.1} parent=43 // pred_check
          _
        $region62: #{tpu_custom_call.1} parent=43 // pred_check_branch
          %320 = sbr.rel target = $region64
        $region63: #{tpu_custom_call.1} parent=43 // pred_region
          %321 = sst [smem:[#allocation13]] [#allocation16]
          %322 = sst [smem:[#allocation14]] [#allocation15]
        $region64: #{tpu_custom_call.1} parent=43 // pred_fallthru
          _
        %324 = shalt.err (0)
        %s326 = sshll.u32 [#allocation2], 4
        %s327 = int_to_ptr.vmem [resolvable:$true] %s326
        %329 = dma.hbm_to_vmem [thread:$0]  %s317, 256, %s327, %s318
        %s330 = sadd.s32 %s298, %s299
        %s331 = smul.addr %s330, 16
        %s332 = scalar_lea.hbm %s0, %s331
        %s333 = scalar_lea.vmem [#allocation2], 80
        %s334 = scalar_lea.sflag [#allocation3], 2
        // Predicated region
        $region65: #{tpu_custom_call.1} parent=43 // pred_check
          _
        $region66: #{tpu_custom_call.1} parent=43 // pred_check_branch
          %336 = sbr.rel target = $region68
        $region67: #{tpu_custom_call.1} parent=43 // pred_region
          %337 = sst [smem:[#allocation13]] [#allocation18]
          %338 = sst [smem:[#allocation14]] [#allocation17]
        $region68: #{tpu_custom_call.1} parent=43 // pred_fallthru
          _
        %340 = shalt.err (0)
        %s342 = sshll.u32 %s333, 4
        %s343 = int_to_ptr.vmem [resolvable:$true] %s342
        %345 = dma.hbm_to_vmem [thread:$0]  %s332, 256, %s343, %s334
        %s346 = smul.u32 16, 1
        %s347 = sshll.u32 %s346, 4
        %348 = dma.done %s318, %s347
        %s349 = sshll.u32 %s346, 4
        %350 = dma.done %s334, %s349
        %s351 = smul.u32 64, 1
        %s352 = sshll.u32 %s351, 4
        %353 = dma.done [#allocation3], %s352
        %v354 = vld [vmem:[#allocation2] sm:$0xff]
        %v355 = vld [vmem:[#allocation2 + $0x8] sm:$0xff]
        %v356 = vld [vmem:[#allocation2 + $0x10] sm:$0xff]
        %v357 = vld [vmem:[#allocation2 + $0x18] sm:$0xff]
        %v358 = vld [vmem:[#allocation2 + $0x20] sm:$0xff]
        %v359 = vld [vmem:[#allocation2 + $0x28] sm:$0xff]
        %v360 = vld [vmem:[#allocation2 + $0x30] sm:$0xff]
        %v361 = vld [vmem:[#allocation2 + $0x38] sm:$0xff]
        %v362 = vld [vmem:[#allocation2 + $0x40] sm:$0xff]
        %v363 = vld [vmem:[#allocation2 + $0x48] sm:$0xff]
        %v364 = vld [vmem:[#allocation2 + $0x50] sm:$0xff]
        %v365 = vld [vmem:[#allocation2 + $0x58] sm:$0xff]
        %v366 = vpack.c.bf16 %v355, %v354
        %v367 = vpack.c.bf16 %v357, %v356
        %v368 = vpack.c.bf16 %v359, %v358
        %v369 = vpack.c.bf16 %v361, %v360
        %v370 = vpack.c.bf16 %v363, %v362
        %v371 = vpack.c.bf16 %v365, %v364
        %v372 = vld [vmem:[#allocation4] sm:$0xf]
        %v373 = vld [vmem:[#allocation4 + $0x4] sm:$0xf]
        %v374 = vld [vmem:[#allocation4 + $0x8] sm:$0xf]
        %v375 = vld [vmem:[#allocation4 + $0xc] sm:$0xf]
        %v376 = vld [vmem:[#allocation4 + $0x10] sm:$0xf]
        %v377 = vld [vmem:[#allocation4 + $0x14] sm:$0xf]
        %v378 = vld [vmem:[#allocation4 + $0x18] sm:$0xf]
        %v379 = vld [vmem:[#allocation4 + $0x1c] sm:$0xf]
        %v380 = vld [vmem:[#allocation4 + $0x20] sm:$0xf]
        %v381 = vld [vmem:[#allocation4 + $0x24] sm:$0xf]
        %v382 = vld [vmem:[#allocation4 + $0x28] sm:$0xf]
        %v383 = vld [vmem:[#allocation4 + $0x2c] sm:$0xf]
        %v384 = vld [vmem:[#allocation4 + $0x30] sm:$0xf]
        %v385 = vld [vmem:[#allocation4 + $0x34] sm:$0xf]
        %v386 = vld [vmem:[#allocation4 + $0x38] sm:$0xf]
        %v387 = vld [vmem:[#allocation4 + $0x3c] sm:$0xf]
        %v388 = vld [vmem:[%s2] sm:$0x1]
        %v390 = vlaneseq
        %v391 = vshrl.u32 %v390, 7
        %v392 = vsub.s32 0, %v391
        %v393 = vrot.slane %v388, %v392
        %v411 = vunpack.c.l.b16 %v372
        %v412 = vunpack.c.l.b16 %v373
        %v413 = vunpack.c.l.b16 %v374
        %v414 = vunpack.c.l.b16 %v375
        %v415 = vunpack.c.l.b16 %v376
        %v416 = vunpack.c.l.b16 %v377
        %v417 = vunpack.c.l.b16 %v378
        %v418 = vunpack.c.l.b16 %v379
        %v419 = vunpack.c.l.b16 %v380
        %v420 = vunpack.c.l.b16 %v381
        %v421 = vunpack.c.l.b16 %v382
        %v422 = vunpack.c.l.b16 %v383
        %v423 = vunpack.c.l.b16 %v384
        %v424 = vunpack.c.l.b16 %v385
        %v425 = vunpack.c.l.b16 %v386
        %v426 = vunpack.c.l.b16 %v387
        %v427 = vpack.c.b16 %v412, %v411
        %v428 = vpack.c.b16 %v414, %v413
        %v429 = vpack.c.b16 %v416, %v415
        %v430 = vpack.c.b16 %v418, %v417
        %v431 = vpack.c.b16 %v420, %v419
        %v432 = vpack.c.b16 %v422, %v421
        %v433 = vpack.c.b16 %v424, %v423
        %v434 = vpack.c.b16 %v426, %v425
        %443 = vmatprep.subr.bf16.mxu0 0
        %444 = vmatpush1.bf16.msra.mxu0 %v434
        %445 = vmatprep.subr.bf16.mxu0 0
        %446 = vmatpush1.bf16.msra.mxu0 %v433
        %447 = vmatprep.subr.bf16.mxu0 0
        %448 = vmatpush1.bf16.msra.mxu0 %v432
        %449 = vmatprep.subr.bf16.mxu0 0
        %450 = vmatpush1.bf16.msra.mxu0 %v431
        %451 = vmatprep.subr.bf16.mxu0 0
        %452 = vmatpush1.bf16.msra.mxu0 %v430
        %453 = vmatprep.subr.bf16.mxu0 0
        %454 = vmatpush1.bf16.msra.mxu0 %v429
        %455 = vmatprep.subr.bf16.mxu0 0
        %456 = vmatpush1.bf16.msra.mxu0 %v428
        %457 = vmatprep.subr.bf16.mxu0 0
        %458 = vmatpush1.bf16.msra.mxu0 %v427
        %459 = vmatprep.subr.bf16.mxu0 0
        %460 = vmatpush2.bf16.msra.mxu0 0
        %461 = vmatprep.subr.bf16.mxu0 0
        %462 = vmatpush2.bf16.msra.mxu0 0
        %463 = vmatprep.subr.bf16.mxu0 0
        %464 = vmatpush2.bf16.msra.mxu0 0
        %465 = vmatprep.subr.bf16.mxu0 0
        %466 = vmatpush2.bf16.msra.mxu0 0
        %467 = vmatprep.subr.bf16.mxu0 0
        %468 = vmatpush2.bf16.msra.mxu0 0
        %469 = vmatprep.subr.bf16.mxu0 0
        %470 = vmatpush2.bf16.msra.mxu0 0
        %471 = vmatprep.subr.bf16.mxu0 0
        %472 = vmatpush2.bf16.msra.mxu0 0
        %473 = vmatprep.subr.bf16.mxu0 0
        %474 = vmatpush2.bf16.msra.mxu0 0
        %475 = vmatprep.mubr.bf16.mxu0 0
        %476 = vmatmul.mubr.bf16.gmra.mxu0 %v366
        %v477 = vpop.f32.mrf.mxu0
        %v478 = vadd.f32 %v393, %v477
        %v479 = vpop.f32.mrf.mxu0
        %v480 = vpop.f32.mrf.mxu0
        %v481 = vadd.f32 %v393, %v480
        %v482 = vpop.f32.mrf.mxu0
        %483 = vmatprep.mubr.bf16.mxu0 0
        %484 = vmatmul.mubr.bf16.gmra.mxu0 %v367
        %v485 = vpop.f32.mrf.mxu0
        %v486 = vadd.f32 %v393, %v485
        %v487 = vpop.f32.mrf.mxu0
        %v488 = vpop.f32.mrf.mxu0
        %v489 = vadd.f32 %v393, %v488
        %v490 = vpop.f32.mrf.mxu0
        %491 = vmatprep.mubr.bf16.mxu0 0
        %492 = vmatmul.mubr.bf16.gmra.mxu0 %v368
        %v493 = vpop.f32.mrf.mxu0
        %v494 = vadd.f32 %v393, %v493
        %v495 = vpop.f32.mrf.mxu0
        %v496 = vpop.f32.mrf.mxu0
        %v497 = vadd.f32 %v393, %v496
        %v498 = vpop.f32.mrf.mxu0
        %499 = vmatprep.mubr.bf16.mxu0 0
        %500 = vmatmul.mubr.bf16.gmra.mxu0 %v369
        %v501 = vpop.f32.mrf.mxu0
        %v502 = vadd.f32 %v393, %v501
        %v503 = vpop.f32.mrf.mxu0
        %v504 = vpop.f32.mrf.mxu0
        %v505 = vadd.f32 %v393, %v504
        %v506 = vpop.f32.mrf.mxu0
        %507 = vmatprep.mubr.bf16.mxu0 0
        %508 = vmatmul.mubr.bf16.gmra.mxu0 %v370
        %v509 = vpop.f32.mrf.mxu0
        %v510 = vadd.f32 %v393, %v509
        %v511 = vpop.f32.mrf.mxu0
        %v512 = vpop.f32.mrf.mxu0
        %v513 = vadd.f32 %v393, %v512
        %v514 = vpop.f32.mrf.mxu0
        %515 = vmatprep.mubr.bf16.mxu0 0
        %516 = vmatmul.mubr.bf16.gmra.mxu0 %v371
        %v517 = vpop.f32.mrf.mxu0
        %v518 = vadd.f32 %v393, %v517
        %v519 = vpop.f32.mrf.mxu0
        %v520 = vpop.f32.mrf.mxu0
        %v521 = vadd.f32 %v393, %v520
        %v522 = vpop.f32.mrf.mxu0
        %523 = vdwg.mxu0
        %v524 = vmax.f32 %v478, 0.0
        %v525 = vmax.f32 %v481, 0.0
        %v526 = vmax.f32 %v486, 0.0
        %v527 = vmax.f32 %v489, 0.0
        %v528 = vmax.f32 %v494, 0.0
        %v529 = vmax.f32 %v497, 0.0
        %v530 = vmax.f32 %v502, 0.0
        %v531 = vmax.f32 %v505, 0.0
        %v532 = vmax.f32 %v510, 0.0
        %v533 = vmax.f32 %v513, 0.0
        %v534 = vmax.f32 %v518, 0.0
        %v535 = vmax.f32 %v521, 0.0
        %v536 = vlaneseq
        %v537 = vshrl.u32 %v536, 7
        %v538 = vadd.s32 %v537, 8
        %v539 = vadd.s32 %v537, 16
        %v540 = vadd.s32 %v537, 24
        %v541 = vadd.s32 %v537, 32
        %v542 = vadd.s32 %v537, 40
        %v543 = vadd.s32 %v537, 48
        %v544 = vadd.s32 %v537, 56
        %v545 = vadd.s32 %v537, 64
        %v546 = vadd.s32 %v537, 72
        %v547 = vadd.s32 %v537, 80
        %v548 = vadd.s32 %v537, 88
        %vm549 = vcmp.lt.s32.totalorder %v537, 16
        %vm550 = vcmp.lt.s32.totalorder %v538, 16
        %vm551 = vcmp.lt.s32.totalorder %v539, 16
        %vm552 = vcmp.lt.s32.totalorder %v540, 16
        %vm553 = vcmp.lt.s32.totalorder %v541, 16
        %vm554 = vcmp.lt.s32.totalorder %v542, 16
        %vm555 = vcmp.lt.s32.totalorder %v543, 16
        %vm556 = vcmp.lt.s32.totalorder %v544, 16
        %vm557 = vcmp.lt.s32.totalorder %v545, 16
        %vm558 = vcmp.lt.s32.totalorder %v546, 16
        %vm559 = vcmp.lt.s32.totalorder %v547, 16
        %vm560 = vcmp.lt.s32.totalorder %v548, 16
        %p561 = scmp.eq.s32.totalorder %s28, 0
        %s562 = scalar_select %p561, 1, 0
        %v563 = vstv %s562
        %vm564 = vcmp.eq.s32.totalorder %v563, 1
        %vm565 = vmand %vm549, %vm564
        %vm566 = vmand %vm550, %vm564
        %vm567 = vmand %vm551, %vm564
        %vm568 = vmand %vm552, %vm564
        %vm569 = vmand %vm553, %vm564
        %vm570 = vmand %vm554, %vm564
        %vm571 = vmand %vm555, %vm564
        %vm572 = vmand %vm556, %vm564
        %vm573 = vmand %vm557, %vm564
        %vm574 = vmand %vm558, %vm564
        %vm575 = vmand %vm559, %vm564
        %vm576 = vmand %vm560, %vm564
        %vm577 = vcmp.ge.s32.totalorder %v537, 80
        %vm578 = vcmp.ge.s32.totalorder %v538, 80
        %vm579 = vcmp.ge.s32.totalorder %v539, 80
        %vm580 = vcmp.ge.s32.totalorder %v540, 80
        %vm581 = vcmp.ge.s32.totalorder %v541, 80
        %vm582 = vcmp.ge.s32.totalorder %v542, 80
        %vm583 = vcmp.ge.s32.totalorder %v543, 80
        %vm584 = vcmp.ge.s32.totalorder %v544, 80
        %vm585 = vcmp.ge.s32.totalorder %v545, 80
        %vm586 = vcmp.ge.s32.totalorder %v546, 80
        %vm587 = vcmp.ge.s32.totalorder %v547, 80
        %vm588 = vcmp.ge.s32.totalorder %v548, 80
        %p589 = scmp.eq.s32.totalorder %s28, 3
        %s590 = scalar_select %p589, 1, 0
        %v591 = vstv %s590
        %vm592 = vcmp.eq.s32.totalorder %v591, 1
        %vm593 = vmand %vm577, %vm592
        %vm594 = vmand %vm578, %vm592
        %vm595 = vmand %vm579, %vm592
        %vm596 = vmand %vm580, %vm592
        %vm597 = vmand %vm581, %vm592
        %vm598 = vmand %vm582, %vm592
        %vm599 = vmand %vm583, %vm592
        %vm600 = vmand %vm584, %vm592
        %vm601 = vmand %vm585, %vm592
        %vm602 = vmand %vm586, %vm592
        %vm603 = vmand %vm587, %vm592
        %vm604 = vmand %vm588, %vm592
        %vm605 = vmor %vm565, %vm593
        %vm606 = vmor %vm566, %vm594
        %vm607 = vmor %vm567, %vm595
        %vm608 = vmor %vm568, %vm596
        %vm609 = vmor %vm569, %vm597
        %vm610 = vmor %vm570, %vm598
        %vm611 = vmor %vm571, %vm599
        %vm612 = vmor %vm572, %vm600
        %vm613 = vmor %vm573, %vm601
        %vm614 = vmor %vm574, %vm602
        %vm615 = vmor %vm575, %vm603
        %vm616 = vmor %vm576, %vm604
        %v617 = vsel %vm605, 1, 0
        %v618 = vsel %vm606, 1, 0
        %v619 = vsel %vm607, 1, 0
        %v620 = vsel %vm608, 1, 0
        %v621 = vsel %vm609, 1, 0
        %v622 = vsel %vm610, 1, 0
        %v623 = vsel %vm611, 1, 0
        %v624 = vsel %vm612, 1, 0
        %v625 = vsel %vm613, 1, 0
        %v626 = vsel %vm614, 1, 0
        %v627 = vsel %vm615, 1, 0
        %v628 = vsel %vm616, 1, 0
        %vm629 = vcmp.eq.s32.totalorder %v617, 1
        %vm630 = vcmp.eq.s32.totalorder %v618, 1
        %vm631 = vcmp.eq.s32.totalorder %v619, 1
        %vm632 = vcmp.eq.s32.totalorder %v620, 1
        %vm633 = vcmp.eq.s32.totalorder %v621, 1
        %vm634 = vcmp.eq.s32.totalorder %v622, 1
        %vm635 = vcmp.eq.s32.totalorder %v623, 1
        %vm636 = vcmp.eq.s32.totalorder %v624, 1
        %vm637 = vcmp.eq.s32.totalorder %v625, 1
        %vm638 = vcmp.eq.s32.totalorder %v626, 1
        %vm639 = vcmp.eq.s32.totalorder %v627, 1
        %vm640 = vcmp.eq.s32.totalorder %v628, 1
        %v641 = vsel %vm629, 0.0, %v524
        %v642 = vsel %vm630, 0.0, %v525
        %v643 = vsel %vm631, 0.0, %v526
        %v644 = vsel %vm632, 0.0, %v527
        %v645 = vsel %vm633, 0.0, %v528
        %v646 = vsel %vm634, 0.0, %v529
        %v647 = vsel %vm635, 0.0, %v530
        %v648 = vsel %vm636, 0.0, %v531
        %v649 = vsel %vm637, 0.0, %v532
        %v650 = vsel %vm638, 0.0, %v533
        %v651 = vsel %vm639, 0.0, %v534
        %v652 = vsel %vm640, 0.0, %v535
        %vm653 = vcmp.lt.s32.totalorder %v537, 0
        %v654 = vsub.s32 0, %v537
        %v655 = vsel %vm653, %v654, %v537
        %v656 = vshrl.u32 %v655, 4
        %v657 = vand.u32 %v655, 15
        %v658 = vsub.s32 0, %v657
        %v659 = vsel %vm653, %v658, %v657
        %vm660 = vcmp.lt.s32.totalorder %v538, 0
        %v661 = vsub.s32 0, %v538
        %v662 = vsel %vm660, %v661, %v538
        %v663 = vshrl.u32 %v662, 4
        %v664 = vand.u32 %v662, 15
        %v665 = vsub.s32 0, %v664
        %v666 = vsel %vm660, %v665, %v664
        %vm667 = vcmp.lt.s32.totalorder %v539, 0
        %v668 = vsub.s32 0, %v539
        %v669 = vsel %vm667, %v668, %v539
        %v670 = vshrl.u32 %v669, 4
        %v671 = vand.u32 %v669, 15
        %v672 = vsub.s32 0, %v671
        %v673 = vsel %vm667, %v672, %v671
        %vm674 = vcmp.lt.s32.totalorder %v540, 0
        %v675 = vsub.s32 0, %v540
        %v676 = vsel %vm674, %v675, %v540
        %v677 = vshrl.u32 %v676, 4
        %v678 = vand.u32 %v676, 15
        %v679 = vsub.s32 0, %v678
        %v680 = vsel %vm674, %v679, %v678
        %vm681 = vcmp.lt.s32.totalorder %v541, 0
        %v682 = vsub.s32 0, %v541
        %v683 = vsel %vm681, %v682, %v541
        %v684 = vshrl.u32 %v683, 4
        %v685 = vand.u32 %v683, 15
        %v686 = vsub.s32 0, %v685
        %v687 = vsel %vm681, %v686, %v685
        %vm688 = vcmp.lt.s32.totalorder %v542, 0
        %v689 = vsub.s32 0, %v542
        %v690 = vsel %vm688, %v689, %v542
        %v691 = vshrl.u32 %v690, 4
        %v692 = vand.u32 %v690, 15
        %v693 = vsub.s32 0, %v692
        %v694 = vsel %vm688, %v693, %v692
        %vm695 = vcmp.lt.s32.totalorder %v543, 0
        %v696 = vsub.s32 0, %v543
        %v697 = vsel %vm695, %v696, %v543
        %v698 = vshrl.u32 %v697, 4
        %v699 = vand.u32 %v697, 15
        %v700 = vsub.s32 0, %v699
        %v701 = vsel %vm695, %v700, %v699
        %vm702 = vcmp.lt.s32.totalorder %v544, 0
        %v703 = vsub.s32 0, %v544
        %v704 = vsel %vm702, %v703, %v544
        %v705 = vshrl.u32 %v704, 4
        %v706 = vand.u32 %v704, 15
        %v707 = vsub.s32 0, %v706
        %v708 = vsel %vm702, %v707, %v706
        %vm709 = vcmp.lt.s32.totalorder %v545, 0
        %v710 = vsub.s32 0, %v545
        %v711 = vsel %vm709, %v710, %v545
        %v712 = vshrl.u32 %v711, 4
        %v713 = vand.u32 %v711, 15
        %v714 = vsub.s32 0, %v713
        %v715 = vsel %vm709, %v714, %v713
        %vm716 = vcmp.lt.s32.totalorder %v546, 0
        %v717 = vsub.s32 0, %v546
        %v718 = vsel %vm716, %v717, %v546
        %v719 = vshrl.u32 %v718, 4
        %v720 = vand.u32 %v718, 15
        %v721 = vsub.s32 0, %v720
        %v722 = vsel %vm716, %v721, %v720
        %vm723 = vcmp.lt.s32.totalorder %v547, 0
        %v724 = vsub.s32 0, %v547
        %v725 = vsel %vm723, %v724, %v547
        %v726 = vshrl.u32 %v725, 4
        %v727 = vand.u32 %v725, 15
        %v728 = vsub.s32 0, %v727
        %v729 = vsel %vm723, %v728, %v727
        %vm730 = vcmp.lt.s32.totalorder %v548, 0
        %v731 = vsub.s32 0, %v548
        %v732 = vsel %vm730, %v731, %v548
        %v733 = vshrl.u32 %v732, 4
        %v734 = vand.u32 %v732, 15
        %v735 = vsub.s32 0, %v734
        %v736 = vsel %vm730, %v735, %v734
        %vm737 = vcmp.ne.s32.totalorder %v659, 0
        %vm738 = vcmp.ne.s32.totalorder %v666, 0
        %vm739 = vcmp.ne.s32.totalorder %v673, 0
        %vm740 = vcmp.ne.s32.totalorder %v680, 0
        %vm741 = vcmp.ne.s32.totalorder %v687, 0
        %vm742 = vcmp.ne.s32.totalorder %v694, 0
        %vm743 = vcmp.ne.s32.totalorder %v701, 0
        %vm744 = vcmp.ne.s32.totalorder %v708, 0
        %vm745 = vcmp.ne.s32.totalorder %v715, 0
        %vm746 = vcmp.ne.s32.totalorder %v722, 0
        %vm747 = vcmp.ne.s32.totalorder %v729, 0
        %vm748 = vcmp.ne.s32.totalorder %v736, 0
        %vm749 = vcmp.lt.s32.totalorder %v659, 0
        %vm750 = vcmp.lt.s32.totalorder %v666, 0
        %vm751 = vcmp.lt.s32.totalorder %v673, 0
        %vm752 = vcmp.lt.s32.totalorder %v680, 0
        %vm753 = vcmp.lt.s32.totalorder %v687, 0
        %vm754 = vcmp.lt.s32.totalorder %v694, 0
        %vm755 = vcmp.lt.s32.totalorder %v701, 0
        %vm756 = vcmp.lt.s32.totalorder %v708, 0
        %vm757 = vcmp.lt.s32.totalorder %v715, 0
        %vm758 = vcmp.lt.s32.totalorder %v722, 0
        %vm759 = vcmp.lt.s32.totalorder %v729, 0
        %vm760 = vcmp.lt.s32.totalorder %v736, 0
        %vm761 = vmand %vm749, %vm737
        %vm762 = vmand %vm750, %vm738
        %vm763 = vmand %vm751, %vm739
        %vm764 = vmand %vm752, %vm740
        %vm765 = vmand %vm753, %vm741
        %vm766 = vmand %vm754, %vm742
        %vm767 = vmand %vm755, %vm743
        %vm768 = vmand %vm756, %vm744
        %vm769 = vmand %vm757, %vm745
        %vm770 = vmand %vm758, %vm746
        %vm771 = vmand %vm759, %vm747
        %vm772 = vmand %vm760, %vm748
        %v773 = vadd.s32 %v659, 16
        %v774 = vadd.s32 %v666, 16
        %v775 = vadd.s32 %v673, 16
        %v776 = vadd.s32 %v680, 16
        %v777 = vadd.s32 %v687, 16
        %v778 = vadd.s32 %v694, 16
        %v779 = vadd.s32 %v701, 16
        %v780 = vadd.s32 %v708, 16
        %v781 = vadd.s32 %v715, 16
        %v782 = vadd.s32 %v722, 16
        %v783 = vadd.s32 %v729, 16
        %v784 = vadd.s32 %v736, 16
        %v785 = vsel %vm761, %v773, %v659
        %v786 = vsel %vm762, %v774, %v666
        %v787 = vsel %vm763, %v775, %v673
        %v788 = vsel %vm764, %v776, %v680
        %v789 = vsel %vm765, %v777, %v687
        %v790 = vsel %vm766, %v778, %v694
        %v791 = vsel %vm767, %v779, %v701
        %v792 = vsel %vm768, %v780, %v708
        %v793 = vsel %vm769, %v781, %v715
        %v794 = vsel %vm770, %v782, %v722
        %v795 = vsel %vm771, %v783, %v729
        %v796 = vsel %vm772, %v784, %v736
        %vm797 = vcmp.eq.s32.totalorder %v785, 15
        %vm798 = vcmp.eq.s32.totalorder %v786, 15
        %vm799 = vcmp.eq.s32.totalorder %v787, 15
        %vm800 = vcmp.eq.s32.totalorder %v788, 15
        %vm801 = vcmp.eq.s32.totalorder %v789, 15
        %vm802 = vcmp.eq.s32.totalorder %v790, 15
        %vm803 = vcmp.eq.s32.totalorder %v791, 15
        %vm804 = vcmp.eq.s32.totalorder %v792, 15
        %vm805 = vcmp.eq.s32.totalorder %v793, 15
        %vm806 = vcmp.eq.s32.totalorder %v794, 15
        %vm807 = vcmp.eq.s32.totalorder %v795, 15
        %vm808 = vcmp.eq.s32.totalorder %v796, 15
        %v809 = vsel %vm797, 1, 0
        %v810 = vsel %vm798, 1, 0
        %v811 = vsel %vm799, 1, 0
        %v812 = vsel %vm800, 1, 0
        %v813 = vsel %vm801, 1, 0
        %v814 = vsel %vm802, 1, 0
        %v815 = vsel %vm803, 1, 0
        %v816 = vsel %vm804, 1, 0
        %v817 = vsel %vm805, 1, 0
        %v818 = vsel %vm806, 1, 0
        %v819 = vsel %vm807, 1, 0
        %v820 = vsel %vm808, 1, 0
        %vm821 = vcmp.eq.s32.totalorder %v809, 1
        %vm822 = vcmp.eq.s32.totalorder %v810, 1
        %vm823 = vcmp.eq.s32.totalorder %v811, 1
        %vm824 = vcmp.eq.s32.totalorder %v812, 1
        %vm825 = vcmp.eq.s32.totalorder %v813, 1
        %vm826 = vcmp.eq.s32.totalorder %v814, 1
        %vm827 = vcmp.eq.s32.totalorder %v815, 1
        %vm828 = vcmp.eq.s32.totalorder %v816, 1
        %vm829 = vcmp.eq.s32.totalorder %v817, 1
        %vm830 = vcmp.eq.s32.totalorder %v818, 1
        %vm831 = vcmp.eq.s32.totalorder %v819, 1
        %vm832 = vcmp.eq.s32.totalorder %v820, 1
        %v833 = vsel %vm821, 0.0, %v641
        %v834 = vsel %vm822, 0.0, %v642
        %v835 = vsel %vm823, 0.0, %v643
        %v836 = vsel %vm824, 0.0, %v644
        %v837 = vsel %vm825, 0.0, %v645
        %v838 = vsel %vm826, 0.0, %v646
        %v839 = vsel %vm827, 0.0, %v647
        %v840 = vsel %vm828, 0.0, %v648
        %v841 = vsel %vm829, 0.0, %v649
        %v842 = vsel %vm830, 0.0, %v650
        %v843 = vsel %vm831, 0.0, %v651
        %v844 = vsel %vm832, 0.0, %v652
        %vm845 = vcmp.eq.s32.totalorder %v785, 0
        %vm846 = vcmp.eq.s32.totalorder %v786, 0
        %vm847 = vcmp.eq.s32.totalorder %v787, 0
        %vm848 = vcmp.eq.s32.totalorder %v788, 0
        %vm849 = vcmp.eq.s32.totalorder %v789, 0
        %vm850 = vcmp.eq.s32.totalorder %v790, 0
        %vm851 = vcmp.eq.s32.totalorder %v791, 0
        %vm852 = vcmp.eq.s32.totalorder %v792, 0
        %vm853 = vcmp.eq.s32.totalorder %v793, 0
        %vm854 = vcmp.eq.s32.totalorder %v794, 0
        %vm855 = vcmp.eq.s32.totalorder %v795, 0
        %vm856 = vcmp.eq.s32.totalorder %v796, 0
        %v857 = vsel %vm845, 1, 0
        %v858 = vsel %vm846, 1, 0
        %v859 = vsel %vm847, 1, 0
        %v860 = vsel %vm848, 1, 0
        %v861 = vsel %vm849, 1, 0
        %v862 = vsel %vm850, 1, 0
        %v863 = vsel %vm851, 1, 0
        %v864 = vsel %vm852, 1, 0
        %v865 = vsel %vm853, 1, 0
        %v866 = vsel %vm854, 1, 0
        %v867 = vsel %vm855, 1, 0
        %v868 = vsel %vm856, 1, 0
        %vm869 = vcmp.eq.s32.totalorder %v857, 1
        %vm870 = vcmp.eq.s32.totalorder %v858, 1
        %vm871 = vcmp.eq.s32.totalorder %v859, 1
        %vm872 = vcmp.eq.s32.totalorder %v860, 1
        %vm873 = vcmp.eq.s32.totalorder %v861, 1
        %vm874 = vcmp.eq.s32.totalorder %v862, 1
        %vm875 = vcmp.eq.s32.totalorder %v863, 1
        %vm876 = vcmp.eq.s32.totalorder %v864, 1
        %vm877 = vcmp.eq.s32.totalorder %v865, 1
        %vm878 = vcmp.eq.s32.totalorder %v866, 1
        %vm879 = vcmp.eq.s32.totalorder %v867, 1
        %vm880 = vcmp.eq.s32.totalorder %v868, 1
        %v881 = vsel %vm869, 0.0, %v641
        %v882 = vsel %vm870, 0.0, %v642
        %v883 = vsel %vm871, 0.0, %v643
        %v884 = vsel %vm872, 0.0, %v644
        %v885 = vsel %vm873, 0.0, %v645
        %v886 = vsel %vm874, 0.0, %v646
        %v887 = vsel %vm875, 0.0, %v647
        %v888 = vsel %vm876, 0.0, %v648
        %v889 = vsel %vm877, 0.0, %v649
        %v890 = vsel %vm878, 0.0, %v650
        %v891 = vsel %vm879, 0.0, %v651
        %v892 = vsel %vm880, 0.0, %v652
        %v893 = vrot.slane %v833, 7
        %v894 = vrot.slane %v834, 7
        %v895 = vrot.slane %v835, 7
        %v896 = vrot.slane %v836, 7
        %v897 = vrot.slane %v837, 7
        %v898 = vrot.slane %v838, 7
        %v899 = vrot.slane %v839, 7
        %v900 = vrot.slane %v840, 7
        %v901 = vrot.slane %v844, 7
        %vm902 = vcmp.lt.s32.totalorder %v537, 1
        %v903 = vsel %vm902, %v899, %v900
        %v904 = vsel %vm902, %v898, %v899
        %v905 = vsel %vm902, %v897, %v898
        %v906 = vsel %vm902, %v896, %v897
        %v907 = vsel %vm902, %v895, %v896
        %v908 = vsel %vm902, %v894, %v895
        %v909 = vsel %vm902, %v893, %v894
        %v910 = vsel %vm902, %v901, %v893
        %v911 = vpack.c.bf16 %v909, %v910
        %v912 = vpack.c.bf16 %v907, %v908
        %v913 = vpack.c.bf16 %v905, %v906
        %v914 = vpack.c.bf16 %v903, %v904
        %v915 = vpack.c.bf16 %v642, %v641
        %v916 = vpack.c.bf16 %v644, %v643
        %v917 = vpack.c.bf16 %v646, %v645
        %v918 = vpack.c.bf16 %v648, %v647
        %v919 = vrot.slane %v881, 1
        %v920 = vrot.slane %v882, 1
        %v921 = vrot.slane %v883, 1
        %v922 = vrot.slane %v884, 1
        %v923 = vrot.slane %v885, 1
        %v924 = vrot.slane %v886, 1
        %v925 = vrot.slane %v887, 1
        %v926 = vrot.slane %v888, 1
        %v927 = vrot.slane %v889, 1
        %vm928 = vcmp.lt.s32.totalorder %v537, 7
        %v929 = vsel %vm928, %v926, %v927
        %v930 = vsel %vm928, %v925, %v926
        %v931 = vsel %vm928, %v924, %v925
        %v932 = vsel %vm928, %v923, %v924
        %v933 = vsel %vm928, %v922, %v923
        %v934 = vsel %vm928, %v921, %v922
        %v935 = vsel %vm928, %v920, %v921
        %v936 = vsel %vm928, %v919, %v920
        %v937 = vpack.c.bf16 %v935, %v936
        %v938 = vpack.c.bf16 %v933, %v934
        %v939 = vpack.c.bf16 %v931, %v932
        %v940 = vpack.c.bf16 %v929, %v930
        %v941 = vrot.slane %v841, 7
        %v942 = vrot.slane %v842, 7
        %v943 = vsel %vm902, %v941, %v942
        %v944 = vsel %vm902, %v900, %v941
        %v945 = vpack.c.bf16 %v943, %v944
        %v946 = vpack.c.bf16 %v650, %v649
        %v947 = vrot.slane %v890, 1
        %v948 = vrot.slane %v891, 1
        %v949 = vsel %vm928, %v947, %v948
        %v950 = vsel %vm928, %v927, %v947
        %v951 = vpack.c.bf16 %v949, %v950
        %v952 = vrot.slane %v843, 7
        %v953 = vsel %vm902, %v952, %v901
        %v954 = vsel %vm902, %v942, %v952
        %v955 = vpack.c.bf16 %v953, %v954
        %v956 = vpack.c.bf16 %v652, %v651
        %v957 = vrot.slane %v892, 1
        %v958 = vsel %vm928, %v948, %v957
        %v959 = vsel %vm928, %v957, %v919
        %v960 = vpack.c.bf16 %v959, %v958
        %v961 = vld [vmem:[#allocation7] sm:$0xf]
        %v962 = vld [vmem:[#allocation7 + $0x4] sm:$0xf]
        %v963 = vld [vmem:[#allocation7 + $0x8] sm:$0xf]
        %v964 = vld [vmem:[#allocation7 + $0xc] sm:$0xf]
        %v965 = vld [vmem:[#allocation7 + $0x10] sm:$0xf]
        %v966 = vld [vmem:[#allocation7 + $0x14] sm:$0xf]
        %v967 = vld [vmem:[#allocation7 + $0x18] sm:$0xf]
        %v968 = vld [vmem:[#allocation7 + $0x1c] sm:$0xf]
        %v969 = vld [vmem:[#allocation7 + $0x20] sm:$0xf]
        %v970 = vld [vmem:[#allocation7 + $0x24] sm:$0xf]
        %v971 = vld [vmem:[#allocation7 + $0x28] sm:$0xf]
        %v972 = vld [vmem:[#allocation7 + $0x2c] sm:$0xf]
        %v973 = vld [vmem:[#allocation7 + $0x30] sm:$0xf]
        %v974 = vld [vmem:[#allocation7 + $0x34] sm:$0xf]
        %v975 = vld [vmem:[#allocation7 + $0x38] sm:$0xf]
        %v976 = vld [vmem:[#allocation7 + $0x3c] sm:$0xf]
        %v977 = vld [vmem:[#allocation7 + $0x40] sm:$0xf]
        %v978 = vld [vmem:[#allocation7 + $0x44] sm:$0xf]
        %v979 = vld [vmem:[#allocation7 + $0x48] sm:$0xf]
        %v980 = vld [vmem:[#allocation7 + $0x4c] sm:$0xf]
        %v981 = vld [vmem:[#allocation7 + $0x50] sm:$0xf]
        %v982 = vld [vmem:[#allocation7 + $0x54] sm:$0xf]
        %v983 = vld [vmem:[#allocation7 + $0x58] sm:$0xf]
        %v984 = vld [vmem:[#allocation7 + $0x5c] sm:$0xf]
        %v985 = vld [vmem:[#allocation7 + $0x60] sm:$0xf]
        %v986 = vld [vmem:[#allocation7 + $0x64] sm:$0xf]
        %v987 = vld [vmem:[#allocation7 + $0x68] sm:$0xf]
        %v988 = vld [vmem:[#allocation7 + $0x6c] sm:$0xf]
        %v989 = vld [vmem:[#allocation7 + $0x70] sm:$0xf]
        %v990 = vld [vmem:[#allocation7 + $0x74] sm:$0xf]
        %v991 = vld [vmem:[#allocation7 + $0x78] sm:$0xf]
        %v992 = vld [vmem:[#allocation7 + $0x7c] sm:$0xf]
        %v993 = vld [vmem:[#allocation7 + $0x80] sm:$0xf]
        %v994 = vld [vmem:[#allocation7 + $0x84] sm:$0xf]
        %v995 = vld [vmem:[#allocation7 + $0x88] sm:$0xf]
        %v996 = vld [vmem:[#allocation7 + $0x8c] sm:$0xf]
        %v997 = vld [vmem:[#allocation7 + $0x90] sm:$0xf]
        %v998 = vld [vmem:[#allocation7 + $0x94] sm:$0xf]
        %v999 = vld [vmem:[#allocation7 + $0x98] sm:$0xf]
        %v1000 = vld [vmem:[#allocation7 + $0x9c] sm:$0xf]
        %v1001 = vld [vmem:[#allocation7 + $0xa0] sm:$0xf]
        %v1002 = vld [vmem:[#allocation7 + $0xa4] sm:$0xf]
        %v1003 = vld [vmem:[#allocation7 + $0xa8] sm:$0xf]
        %v1004 = vld [vmem:[#allocation7 + $0xac] sm:$0xf]
        %v1005 = vld [vmem:[#allocation7 + $0xb0] sm:$0xf]
        %v1006 = vld [vmem:[#allocation7 + $0xb4] sm:$0xf]
        %v1007 = vld [vmem:[#allocation7 + $0xb8] sm:$0xf]
        %v1008 = vld [vmem:[#allocation7 + $0xbc] sm:$0xf]
        %v1009 = vld [vmem:[#allocation7 + $0xc0] sm:$0xf]
        %v1010 = vld [vmem:[#allocation7 + $0xc4] sm:$0xf]
        %v1011 = vld [vmem:[#allocation7 + $0xc8] sm:$0xf]
        %v1012 = vld [vmem:[#allocation7 + $0xcc] sm:$0xf]
        %v1013 = vld [vmem:[#allocation7 + $0xd0] sm:$0xf]
        %v1014 = vld [vmem:[#allocation7 + $0xd4] sm:$0xf]
        %v1015 = vld [vmem:[#allocation7 + $0xd8] sm:$0xf]
        %v1016 = vld [vmem:[#allocation7 + $0xdc] sm:$0xf]
        %v1017 = vld [vmem:[#allocation7 + $0xe0] sm:$0xf]
        %v1018 = vld [vmem:[#allocation7 + $0xe4] sm:$0xf]
        %v1019 = vld [vmem:[#allocation7 + $0xe8] sm:$0xf]
        %v1020 = vld [vmem:[#allocation7 + $0xec] sm:$0xf]
        %v1021 = vld [vmem:[#allocation7 + $0xf0] sm:$0xf]
        %v1022 = vld [vmem:[#allocation7 + $0xf4] sm:$0xf]
        %v1023 = vld [vmem:[#allocation7 + $0xf8] sm:$0xf]
        %v1024 = vld [vmem:[#allocation7 + $0xfc] sm:$0xf]
        %v1025 = vld [vmem:[#allocation7 + $0x100] sm:$0xf]
        %v1026 = vld [vmem:[#allocation7 + $0x104] sm:$0xf]
        %v1027 = vld [vmem:[#allocation7 + $0x108] sm:$0xf]
        %v1028 = vld [vmem:[#allocation7 + $0x10c] sm:$0xf]
        %v1029 = vld [vmem:[#allocation7 + $0x110] sm:$0xf]
        %v1030 = vld [vmem:[#allocation7 + $0x114] sm:$0xf]
        %v1031 = vld [vmem:[#allocation7 + $0x118] sm:$0xf]
        %v1032 = vld [vmem:[#allocation7 + $0x11c] sm:$0xf]
        %v1033 = vld [vmem:[#allocation7 + $0x120] sm:$0xf]
        %v1034 = vld [vmem:[#allocation7 + $0x124] sm:$0xf]
        %v1035 = vld [vmem:[#allocation7 + $0x128] sm:$0xf]
        %v1036 = vld [vmem:[#allocation7 + $0x12c] sm:$0xf]
        %v1037 = vld [vmem:[#allocation7 + $0x130] sm:$0xf]
        %v1038 = vld [vmem:[#allocation7 + $0x134] sm:$0xf]
        %v1039 = vld [vmem:[#allocation7 + $0x138] sm:$0xf]
        %v1040 = vld [vmem:[#allocation7 + $0x13c] sm:$0xf]
        %v1041 = vld [vmem:[#allocation7 + $0x140] sm:$0xf]
        %v1042 = vld [vmem:[#allocation7 + $0x144] sm:$0xf]
        %v1043 = vld [vmem:[#allocation7 + $0x148] sm:$0xf]
        %v1044 = vld [vmem:[#allocation7 + $0x14c] sm:$0xf]
        %v1045 = vld [vmem:[#allocation7 + $0x150] sm:$0xf]
        %v1046 = vld [vmem:[#allocation7 + $0x154] sm:$0xf]
        %v1047 = vld [vmem:[#allocation7 + $0x158] sm:$0xf]
        %v1048 = vld [vmem:[#allocation7 + $0x15c] sm:$0xf]
        %v1049 = vld [vmem:[#allocation7 + $0x160] sm:$0xf]
        %v1050 = vld [vmem:[#allocation7 + $0x164] sm:$0xf]
        %v1051 = vld [vmem:[#allocation7 + $0x168] sm:$0xf]
        %v1052 = vld [vmem:[#allocation7 + $0x16c] sm:$0xf]
        %v1053 = vld [vmem:[#allocation7 + $0x170] sm:$0xf]
        %v1054 = vld [vmem:[#allocation7 + $0x174] sm:$0xf]
        %v1055 = vld [vmem:[#allocation7 + $0x178] sm:$0xf]
        %v1056 = vld [vmem:[#allocation7 + $0x17c] sm:$0xf]
        %v1057 = vld [vmem:[#allocation7 + $0x180] sm:$0xf]
        %v1058 = vld [vmem:[#allocation7 + $0x184] sm:$0xf]
        %v1059 = vld [vmem:[#allocation7 + $0x188] sm:$0xf]
        %v1060 = vld [vmem:[#allocation7 + $0x18c] sm:$0xf]
        %v1061 = vld [vmem:[#allocation7 + $0x190] sm:$0xf]
        %v1062 = vld [vmem:[#allocation7 + $0x194] sm:$0xf]
        %v1063 = vld [vmem:[#allocation7 + $0x198] sm:$0xf]
        %v1064 = vld [vmem:[#allocation7 + $0x19c] sm:$0xf]
        %v1065 = vld [vmem:[#allocation7 + $0x1a0] sm:$0xf]
        %v1066 = vld [vmem:[#allocation7 + $0x1a4] sm:$0xf]
        %v1067 = vld [vmem:[#allocation7 + $0x1a8] sm:$0xf]
        %v1068 = vld [vmem:[#allocation7 + $0x1ac] sm:$0xf]
        %v1069 = vld [vmem:[#allocation7 + $0x1b0] sm:$0xf]
        %v1070 = vld [vmem:[#allocation7 + $0x1b4] sm:$0xf]
        %v1071 = vld [vmem:[#allocation7 + $0x1b8] sm:$0xf]
        %v1072 = vld [vmem:[#allocation7 + $0x1bc] sm:$0xf]
        %v1073 = vld [vmem:[#allocation7 + $0x1c0] sm:$0xf]
        %v1074 = vld [vmem:[#allocation7 + $0x1c4] sm:$0xf]
        %v1075 = vld [vmem:[#allocation7 + $0x1c8] sm:$0xf]
        %v1076 = vld [vmem:[#allocation7 + $0x1cc] sm:$0xf]
        %v1077 = vld [vmem:[#allocation7 + $0x1d0] sm:$0xf]
        %v1078 = vld [vmem:[#allocation7 + $0x1d4] sm:$0xf]
        %v1079 = vld [vmem:[#allocation7 + $0x1d8] sm:$0xf]
        %v1080 = vld [vmem:[#allocation7 + $0x1dc] sm:$0xf]
        %v1081 = vld [vmem:[#allocation7 + $0x1e0] sm:$0xf]
        %v1082 = vld [vmem:[#allocation7 + $0x1e4] sm:$0xf]
        %v1083 = vld [vmem:[#allocation7 + $0x1e8] sm:$0xf]
        %v1084 = vld [vmem:[#allocation7 + $0x1ec] sm:$0xf]
        %v1085 = vld [vmem:[#allocation7 + $0x1f0] sm:$0xf]
        %v1086 = vld [vmem:[#allocation7 + $0x1f4] sm:$0xf]
        %v1087 = vld [vmem:[#allocation7 + $0x1f8] sm:$0xf]
        %v1088 = vld [vmem:[#allocation7 + $0x1fc] sm:$0xf]
        %v1089 = vld [vmem:[#allocation7 + $0x200] sm:$0xf]
        %v1090 = vld [vmem:[#allocation7 + $0x204] sm:$0xf]
        %v1091 = vld [vmem:[#allocation7 + $0x208] sm:$0xf]
        %v1092 = vld [vmem:[#allocation7 + $0x20c] sm:$0xf]
        %v1093 = vld [vmem:[#allocation7 + $0x210] sm:$0xf]
        %v1094 = vld [vmem:[#allocation7 + $0x214] sm:$0xf]
        %v1095 = vld [vmem:[#allocation7 + $0x218] sm:$0xf]
        %v1096 = vld [vmem:[#allocation7 + $0x21c] sm:$0xf]
        %v1097 = vld [vmem:[#allocation7 + $0x220] sm:$0xf]
        %v1098 = vld [vmem:[#allocation7 + $0x224] sm:$0xf]
        %v1099 = vld [vmem:[#allocation7 + $0x228] sm:$0xf]
        %v1100 = vld [vmem:[#allocation7 + $0x22c] sm:$0xf]
        %v1101 = vld [vmem:[#allocation7 + $0x230] sm:$0xf]
        %v1102 = vld [vmem:[#allocation7 + $0x234] sm:$0xf]
        %v1103 = vld [vmem:[#allocation7 + $0x238] sm:$0xf]
        %v1104 = vld [vmem:[#allocation7 + $0x23c] sm:$0xf]
        %v1105 = vld [vmem:[%s4] sm:$0x1]
        %v1107 = vlaneseq
        %v1108 = vshrl.u32 %v1107, 7
        %v1109 = vsub.s32 0, %v1108
        %v1110 = vrot.slane %v1105, %v1109
        %v1256 = vunpack.c.l.b16 %v961
        %v1257 = vunpack.c.l.b16 %v962
        %v1258 = vunpack.c.l.b16 %v963
        %v1259 = vunpack.c.l.b16 %v964
        %v1260 = vunpack.c.l.b16 %v965
        %v1261 = vunpack.c.l.b16 %v966
        %v1262 = vunpack.c.l.b16 %v967
        %v1263 = vunpack.c.l.b16 %v968
        %v1264 = vunpack.c.l.b16 %v969
        %v1265 = vunpack.c.l.b16 %v970
        %v1266 = vunpack.c.l.b16 %v971
        %v1267 = vunpack.c.l.b16 %v972
        %v1268 = vunpack.c.l.b16 %v973
        %v1269 = vunpack.c.l.b16 %v974
        %v1270 = vunpack.c.l.b16 %v975
        %v1271 = vunpack.c.l.b16 %v976
        %v1272 = vunpack.c.l.b16 %v977
        %v1273 = vunpack.c.l.b16 %v978
        %v1274 = vunpack.c.l.b16 %v979
        %v1275 = vunpack.c.l.b16 %v980
        %v1276 = vunpack.c.l.b16 %v981
        %v1277 = vunpack.c.l.b16 %v982
        %v1278 = vunpack.c.l.b16 %v983
        %v1279 = vunpack.c.l.b16 %v984
        %v1280 = vunpack.c.l.b16 %v985
        %v1281 = vunpack.c.l.b16 %v986
        %v1282 = vunpack.c.l.b16 %v987
        %v1283 = vunpack.c.l.b16 %v988
        %v1284 = vunpack.c.l.b16 %v989
        %v1285 = vunpack.c.l.b16 %v990
        %v1286 = vunpack.c.l.b16 %v991
        %v1287 = vunpack.c.l.b16 %v992
        %v1288 = vunpack.c.l.b16 %v993
        %v1289 = vunpack.c.l.b16 %v994
        %v1290 = vunpack.c.l.b16 %v995
        %v1291 = vunpack.c.l.b16 %v996
        %v1292 = vunpack.c.l.b16 %v997
        %v1293 = vunpack.c.l.b16 %v998
        %v1294 = vunpack.c.l.b16 %v999
        %v1295 = vunpack.c.l.b16 %v1000
        %v1296 = vunpack.c.l.b16 %v1001
        %v1297 = vunpack.c.l.b16 %v1002
        %v1298 = vunpack.c.l.b16 %v1003
        %v1299 = vunpack.c.l.b16 %v1004
        %v1300 = vunpack.c.l.b16 %v1005
        %v1301 = vunpack.c.l.b16 %v1006
        %v1302 = vunpack.c.l.b16 %v1007
        %v1303 = vunpack.c.l.b16 %v1008
        %v1304 = vunpack.c.l.b16 %v1009
        %v1305 = vunpack.c.l.b16 %v1010
        %v1306 = vunpack.c.l.b16 %v1011
        %v1307 = vunpack.c.l.b16 %v1012
        %v1308 = vunpack.c.l.b16 %v1013
        %v1309 = vunpack.c.l.b16 %v1014
        %v1310 = vunpack.c.l.b16 %v1015
        %v1311 = vunpack.c.l.b16 %v1016
        %v1312 = vunpack.c.l.b16 %v1017
        %v1313 = vunpack.c.l.b16 %v1018
        %v1314 = vunpack.c.l.b16 %v1019
        %v1315 = vunpack.c.l.b16 %v1020
        %v1316 = vunpack.c.l.b16 %v1021
        %v1317 = vunpack.c.l.b16 %v1022
        %v1318 = vunpack.c.l.b16 %v1023
        %v1319 = vunpack.c.l.b16 %v1024
        %v1320 = vunpack.c.l.b16 %v1025
        %v1321 = vunpack.c.l.b16 %v1026
        %v1322 = vunpack.c.l.b16 %v1027
        %v1323 = vunpack.c.l.b16 %v1028
        %v1324 = vunpack.c.l.b16 %v1029
        %v1325 = vunpack.c.l.b16 %v1030
        %v1326 = vunpack.c.l.b16 %v1031
        %v1327 = vunpack.c.l.b16 %v1032
        %v1328 = vunpack.c.l.b16 %v1033
        %v1329 = vunpack.c.l.b16 %v1034
        %v1330 = vunpack.c.l.b16 %v1035
        %v1331 = vunpack.c.l.b16 %v1036
        %v1332 = vunpack.c.l.b16 %v1037
        %v1333 = vunpack.c.l.b16 %v1038
        %v1334 = vunpack.c.l.b16 %v1039
        %v1335 = vunpack.c.l.b16 %v1040
        %v1336 = vunpack.c.l.b16 %v1041
        %v1337 = vunpack.c.l.b16 %v1042
        %v1338 = vunpack.c.l.b16 %v1043
        %v1339 = vunpack.c.l.b16 %v1044
        %v1340 = vunpack.c.l.b16 %v1045
        %v1341 = vunpack.c.l.b16 %v1046
        %v1342 = vunpack.c.l.b16 %v1047
        %v1343 = vunpack.c.l.b16 %v1048
        %v1344 = vunpack.c.l.b16 %v1049
        %v1345 = vunpack.c.l.b16 %v1050
        %v1346 = vunpack.c.l.b16 %v1051
        %v1347 = vunpack.c.l.b16 %v1052
        %v1348 = vunpack.c.l.b16 %v1053
        %v1349 = vunpack.c.l.b16 %v1054
        %v1350 = vunpack.c.l.b16 %v1055
        %v1351 = vunpack.c.l.b16 %v1056
        %v1352 = vunpack.c.l.b16 %v1057
        %v1353 = vunpack.c.l.b16 %v1058
        %v1354 = vunpack.c.l.b16 %v1059
        %v1355 = vunpack.c.l.b16 %v1060
        %v1356 = vunpack.c.l.b16 %v1061
        %v1357 = vunpack.c.l.b16 %v1062
        %v1358 = vunpack.c.l.b16 %v1063
        %v1359 = vunpack.c.l.b16 %v1064
        %v1360 = vunpack.c.l.b16 %v1065
        %v1361 = vunpack.c.l.b16 %v1066
        %v1362 = vunpack.c.l.b16 %v1067
        %v1363 = vunpack.c.l.b16 %v1068
        %v1364 = vunpack.c.l.b16 %v1069
        %v1365 = vunpack.c.l.b16 %v1070
        %v1366 = vunpack.c.l.b16 %v1071
        %v1367 = vunpack.c.l.b16 %v1072
        %v1368 = vunpack.c.l.b16 %v1073
        %v1369 = vunpack.c.l.b16 %v1074
        %v1370 = vunpack.c.l.b16 %v1075
        %v1371 = vunpack.c.l.b16 %v1076
        %v1372 = vunpack.c.l.b16 %v1077
        %v1373 = vunpack.c.l.b16 %v1078
        %v1374 = vunpack.c.l.b16 %v1079
        %v1375 = vunpack.c.l.b16 %v1080
        %v1376 = vunpack.c.l.b16 %v1081
        %v1377 = vunpack.c.l.b16 %v1082
        %v1378 = vunpack.c.l.b16 %v1083
        %v1379 = vunpack.c.l.b16 %v1084
        %v1380 = vunpack.c.l.b16 %v1085
        %v1381 = vunpack.c.l.b16 %v1086
        %v1382 = vunpack.c.l.b16 %v1087
        %v1383 = vunpack.c.l.b16 %v1088
        %v1384 = vunpack.c.l.b16 %v1089
        %v1385 = vunpack.c.l.b16 %v1090
        %v1386 = vunpack.c.l.b16 %v1091
        %v1387 = vunpack.c.l.b16 %v1092
        %v1388 = vunpack.c.l.b16 %v1093
        %v1389 = vunpack.c.l.b16 %v1094
        %v1390 = vunpack.c.l.b16 %v1095
        %v1391 = vunpack.c.l.b16 %v1096
        %v1392 = vunpack.c.l.b16 %v1097
        %v1393 = vunpack.c.l.b16 %v1098
        %v1394 = vunpack.c.l.b16 %v1099
        %v1395 = vunpack.c.l.b16 %v1100
        %v1396 = vunpack.c.l.b16 %v1101
        %v1397 = vunpack.c.l.b16 %v1102
        %v1398 = vunpack.c.l.b16 %v1103
        %v1399 = vunpack.c.l.b16 %v1104
        %v1400 = vpack.c.b16 %v1257, %v1256
        %v1401 = vpack.c.b16 %v1259, %v1258
        %v1402 = vpack.c.b16 %v1261, %v1260
        %v1403 = vpack.c.b16 %v1263, %v1262
        %v1404 = vpack.c.b16 %v1265, %v1264
        %v1405 = vpack.c.b16 %v1267, %v1266
        %v1406 = vpack.c.b16 %v1269, %v1268
        %v1407 = vpack.c.b16 %v1271, %v1270
        %v1408 = vpack.c.b16 %v1273, %v1272
        %v1409 = vpack.c.b16 %v1275, %v1274
        %v1410 = vpack.c.b16 %v1277, %v1276
        %v1411 = vpack.c.b16 %v1279, %v1278
        %v1412 = vpack.c.b16 %v1281, %v1280
        %v1413 = vpack.c.b16 %v1283, %v1282
        %v1414 = vpack.c.b16 %v1285, %v1284
        %v1415 = vpack.c.b16 %v1287, %v1286
        %v1416 = vpack.c.b16 %v1289, %v1288
        %v1417 = vpack.c.b16 %v1291, %v1290
        %v1418 = vpack.c.b16 %v1293, %v1292
        %v1419 = vpack.c.b16 %v1295, %v1294
        %v1420 = vpack.c.b16 %v1297, %v1296
        %v1421 = vpack.c.b16 %v1299, %v1298
        %v1422 = vpack.c.b16 %v1301, %v1300
        %v1423 = vpack.c.b16 %v1303, %v1302
        %v1424 = vpack.c.b16 %v1305, %v1304
        %v1425 = vpack.c.b16 %v1307, %v1306
        %v1426 = vpack.c.b16 %v1309, %v1308
        %v1427 = vpack.c.b16 %v1311, %v1310
        %v1428 = vpack.c.b16 %v1313, %v1312
        %v1429 = vpack.c.b16 %v1315, %v1314
        %v1430 = vpack.c.b16 %v1317, %v1316
        %v1431 = vpack.c.b16 %v1319, %v1318
        %v1432 = vpack.c.b16 %v1321, %v1320
        %v1433 = vpack.c.b16 %v1323, %v1322
        %v1434 = vpack.c.b16 %v1325, %v1324
        %v1435 = vpack.c.b16 %v1327, %v1326
        %v1436 = vpack.c.b16 %v1329, %v1328
        %v1437 = vpack.c.b16 %v1331, %v1330
        %v1438 = vpack.c.b16 %v1333, %v1332
        %v1439 = vpack.c.b16 %v1335, %v1334
        %v1440 = vpack.c.b16 %v1337, %v1336
        %v1441 = vpack.c.b16 %v1339, %v1338
        %v1442 = vpack.c.b16 %v1341, %v1340
        %v1443 = vpack.c.b16 %v1343, %v1342
        %v1444 = vpack.c.b16 %v1345, %v1344
        %v1445 = vpack.c.b16 %v1347, %v1346
        %v1446 = vpack.c.b16 %v1349, %v1348
        %v1447 = vpack.c.b16 %v1351, %v1350
        %v1448 = vpack.c.b16 %v1353, %v1352
        %v1449 = vpack.c.b16 %v1355, %v1354
        %v1450 = vpack.c.b16 %v1357, %v1356
        %v1451 = vpack.c.b16 %v1359, %v1358
        %v1452 = vpack.c.b16 %v1361, %v1360
        %v1453 = vpack.c.b16 %v1363, %v1362
        %v1454 = vpack.c.b16 %v1365, %v1364
        %v1455 = vpack.c.b16 %v1367, %v1366
        %v1456 = vpack.c.b16 %v1369, %v1368
        %v1457 = vpack.c.b16 %v1371, %v1370
        %v1458 = vpack.c.b16 %v1373, %v1372
        %v1459 = vpack.c.b16 %v1375, %v1374
        %v1460 = vpack.c.b16 %v1377, %v1376
        %v1461 = vpack.c.b16 %v1379, %v1378
        %v1462 = vpack.c.b16 %v1381, %v1380
        %v1463 = vpack.c.b16 %v1383, %v1382
        %v1464 = vpack.c.b16 %v1385, %v1384
        %v1465 = vpack.c.b16 %v1387, %v1386
        %v1466 = vpack.c.b16 %v1389, %v1388
        %v1467 = vpack.c.b16 %v1391, %v1390
        %v1468 = vpack.c.b16 %v1393, %v1392
        %v1469 = vpack.c.b16 %v1395, %v1394
        %v1470 = vpack.c.b16 %v1397, %v1396
        %v1471 = vpack.c.b16 %v1399, %v1398
        %1544 = vmatprep.subr.bf16.mxu0 0
        %1545 = vmatpush1.bf16.msra.mxu0 %v1407
        %1546 = vmatprep.subr.bf16.mxu0 0
        %1547 = vmatpush1.bf16.msra.mxu0 %v1406
        %1548 = vmatprep.subr.bf16.mxu0 0
        %1549 = vmatpush1.bf16.msra.mxu0 %v1405
        %1550 = vmatprep.subr.bf16.mxu0 0
        %1551 = vmatpush1.bf16.msra.mxu0 %v1404
        %1552 = vmatprep.subr.bf16.mxu0 0
        %1553 = vmatpush1.bf16.msra.mxu0 %v1403
        %1554 = vmatprep.subr.bf16.mxu0 0
        %1555 = vmatpush1.bf16.msra.mxu0 %v1402
        %1556 = vmatprep.subr.bf16.mxu0 0
        %1557 = vmatpush1.bf16.msra.mxu0 %v1401
        %1558 = vmatprep.subr.bf16.mxu0 0
        %1559 = vmatpush1.bf16.msra.mxu0 %v1400
        %1560 = vmatprep.subr.bf16.mxu0 0
        %1561 = vmatpush2.bf16.msra.mxu0 %v1415
        %1562 = vmatprep.subr.bf16.mxu0 0
        %1563 = vmatpush2.bf16.msra.mxu0 %v1414
        %1564 = vmatprep.subr.bf16.mxu0 0
        %1565 = vmatpush2.bf16.msra.mxu0 %v1413
        %1566 = vmatprep.subr.bf16.mxu0 0
        %1567 = vmatpush2.bf16.msra.mxu0 %v1412
        %1568 = vmatprep.subr.bf16.mxu0 0
        %1569 = vmatpush2.bf16.msra.mxu0 %v1411
        %1570 = vmatprep.subr.bf16.mxu0 0
        %1571 = vmatpush2.bf16.msra.mxu0 %v1410
        %1572 = vmatprep.subr.bf16.mxu0 0
        %1573 = vmatpush2.bf16.msra.mxu0 %v1409
        %1574 = vmatprep.subr.bf16.mxu0 0
        %1575 = vmatpush2.bf16.msra.mxu0 %v1408
        %1576 = vmatprep.mubr.bf16.mxu0 %v915
        %1577 = vmatmul.mubr.bf16.gmra.mxu0 %v911
        %v1578 = vpop.f32.mrf.mxu0
        %v1579 = vadd.f32 %v1110, %v1578
        %v1580 = vpop.f32.mrf.mxu0
        %v1581 = vpop.f32.mrf.mxu0
        %v1582 = vadd.f32 %v1110, %v1581
        %v1583 = vpop.f32.mrf.mxu0
        %1584 = vmatprep.mubr.bf16.mxu0 %v916
        %1585 = vmatmul.mubr.bf16.gmra.mxu0 %v912
        %v1586 = vpop.f32.mrf.mxu0
        %v1587 = vadd.f32 %v1110, %v1586
        %v1588 = vpop.f32.mrf.mxu0
        %v1589 = vpop.f32.mrf.mxu0
        %v1590 = vadd.f32 %v1110, %v1589
        %v1591 = vpop.f32.mrf.mxu0
        %1592 = vmatprep.mubr.bf16.mxu0 %v917
        %1593 = vmatmul.mubr.bf16.gmra.mxu0 %v913
        %v1594 = vpop.f32.mrf.mxu0
        %v1595 = vadd.f32 %v1110, %v1594
        %v1596 = vpop.f32.mrf.mxu0
        %v1597 = vpop.f32.mrf.mxu0
        %v1598 = vadd.f32 %v1110, %v1597
        %v1599 = vpop.f32.mrf.mxu0
        %1600 = vmatprep.mubr.bf16.mxu0 %v918
        %1601 = vmatmul.mubr.bf16.gmra.mxu0 %v914
        %v1602 = vpop.f32.mrf.mxu0
        %v1603 = vadd.f32 %v1110, %v1602
        %v1604 = vpop.f32.mrf.mxu0
        %v1605 = vpop.f32.mrf.mxu0
        %v1606 = vadd.f32 %v1110, %v1605
        %v1607 = vpop.f32.mrf.mxu0
        %1608 = vdwg.mxu0
        %1609 = vmatprep.subr.bf16.mxu0 0
        %1610 = vmatpush1.bf16.msra.mxu0 %v1423
        %1611 = vmatprep.subr.bf16.mxu0 0
        %1612 = vmatpush1.bf16.msra.mxu0 %v1422
        %1613 = vmatprep.subr.bf16.mxu0 0
        %1614 = vmatpush1.bf16.msra.mxu0 %v1421
        %1615 = vmatprep.subr.bf16.mxu0 0
        %1616 = vmatpush1.bf16.msra.mxu0 %v1420
        %1617 = vmatprep.subr.bf16.mxu0 0
        %1618 = vmatpush1.bf16.msra.mxu0 %v1419
        %1619 = vmatprep.subr.bf16.mxu0 0
        %1620 = vmatpush1.bf16.msra.mxu0 %v1418
        %1621 = vmatprep.subr.bf16.mxu0 0
        %1622 = vmatpush1.bf16.msra.mxu0 %v1417
        %1623 = vmatprep.subr.bf16.mxu0 0
        %1624 = vmatpush1.bf16.msra.mxu0 %v1416
        %1625 = vmatprep.subr.bf16.mxu0 0
        %1626 = vmatpush2.bf16.msra.mxu0 %v1431
        %1627 = vmatprep.subr.bf16.mxu0 0
        %1628 = vmatpush2.bf16.msra.mxu0 %v1430
        %1629 = vmatprep.subr.bf16.mxu0 0
        %1630 = vmatpush2.bf16.msra.mxu0 %v1429
        %1631 = vmatprep.subr.bf16.mxu0 0
        %1632 = vmatpush2.bf16.msra.mxu0 %v1428
        %1633 = vmatprep.subr.bf16.mxu0 0
        %1634 = vmatpush2.bf16.msra.mxu0 %v1427
        %1635 = vmatprep.subr.bf16.mxu0 0
        %1636 = vmatpush2.bf16.msra.mxu0 %v1426
        %1637 = vmatprep.subr.bf16.mxu0 0
        %1638 = vmatpush2.bf16.msra.mxu0 %v1425
        %1639 = vmatprep.subr.bf16.mxu0 0
        %1640 = vmatpush2.bf16.msra.mxu0 %v1424
        %1641 = vmatprep.mubr.bf16.mxu0 %v912
        %1642 = vmatmul.mubr.bf16.gmra.mxu0 %v937
        %v1643 = vpop.f32.mrf.mxu0
        %v1644 = vadd.f32 %v1579, %v1643
        %v1645 = vpop.f32.mrf.mxu0
        %v1646 = vpop.f32.mrf.mxu0
        %v1647 = vadd.f32 %v1582, %v1646
        %v1648 = vpop.f32.mrf.mxu0
        %1649 = vmatprep.mubr.bf16.mxu0 %v913
        %1650 = vmatmul.mubr.bf16.gmra.mxu0 %v938
        %v1651 = vpop.f32.mrf.mxu0
        %v1652 = vadd.f32 %v1587, %v1651
        %v1653 = vpop.f32.mrf.mxu0
        %v1654 = vpop.f32.mrf.mxu0
        %v1655 = vadd.f32 %v1590, %v1654
        %v1656 = vpop.f32.mrf.mxu0
        %1657 = vmatprep.mubr.bf16.mxu0 %v914
        %1658 = vmatmul.mubr.bf16.gmra.mxu0 %v939
        %v1659 = vpop.f32.mrf.mxu0
        %v1660 = vadd.f32 %v1595, %v1659
        %v1661 = vpop.f32.mrf.mxu0
        %v1662 = vpop.f32.mrf.mxu0
        %v1663 = vadd.f32 %v1598, %v1662
        %v1664 = vpop.f32.mrf.mxu0
        %1665 = vmatprep.mubr.bf16.mxu0 %v945
        %1666 = vmatmul.mubr.bf16.gmra.mxu0 %v940
        %v1667 = vpop.f32.mrf.mxu0
        %v1668 = vadd.f32 %v1603, %v1667
        %v1669 = vpop.f32.mrf.mxu0
        %v1670 = vpop.f32.mrf.mxu0
        %v1671 = vadd.f32 %v1606, %v1670
        %v1672 = vpop.f32.mrf.mxu0
        %1673 = vdwg.mxu0
        %1674 = vmatprep.subr.bf16.mxu0 0
        %1675 = vmatpush1.bf16.msra.mxu0 %v1439
        %1676 = vmatprep.subr.bf16.mxu0 0
        %1677 = vmatpush1.bf16.msra.mxu0 %v1438
        %1678 = vmatprep.subr.bf16.mxu0 0
        %1679 = vmatpush1.bf16.msra.mxu0 %v1437
        %1680 = vmatprep.subr.bf16.mxu0 0
        %1681 = vmatpush1.bf16.msra.mxu0 %v1436
        %1682 = vmatprep.subr.bf16.mxu0 0
        %1683 = vmatpush1.bf16.msra.mxu0 %v1435
        %1684 = vmatprep.subr.bf16.mxu0 0
        %1685 = vmatpush1.bf16.msra.mxu0 %v1434
        %1686 = vmatprep.subr.bf16.mxu0 0
        %1687 = vmatpush1.bf16.msra.mxu0 %v1433
        %1688 = vmatprep.subr.bf16.mxu0 0
        %1689 = vmatpush1.bf16.msra.mxu0 %v1432
        %1690 = vmatprep.subr.bf16.mxu0 0
        %1691 = vmatpush2.bf16.msra.mxu0 %v1447
        %1692 = vmatprep.subr.bf16.mxu0 0
        %1693 = vmatpush2.bf16.msra.mxu0 %v1446
        %1694 = vmatprep.subr.bf16.mxu0 0
        %1695 = vmatpush2.bf16.msra.mxu0 %v1445
        %1696 = vmatprep.subr.bf16.mxu0 0
        %1697 = vmatpush2.bf16.msra.mxu0 %v1444
        %1698 = vmatprep.subr.bf16.mxu0 0
        %1699 = vmatpush2.bf16.msra.mxu0 %v1443
        %1700 = vmatprep.subr.bf16.mxu0 0
        %1701 = vmatpush2.bf16.msra.mxu0 %v1442
        %1702 = vmatprep.subr.bf16.mxu0 0
        %1703 = vmatpush2.bf16.msra.mxu0 %v1441
        %1704 = vmatprep.subr.bf16.mxu0 0
        %1705 = vmatpush2.bf16.msra.mxu0 %v1440
        %1706 = vmatprep.mubr.bf16.mxu0 %v938
        %1707 = vmatmul.mubr.bf16.gmra.mxu0 %v916
        %v1708 = vpop.f32.mrf.mxu0
        %v1709 = vadd.f32 %v1644, %v1708
        %v1710 = vpop.f32.mrf.mxu0
        %v1711 = vpop.f32.mrf.mxu0
        %v1712 = vadd.f32 %v1647, %v1711
        %v1713 = vpop.f32.mrf.mxu0
        %1714 = vmatprep.mubr.bf16.mxu0 %v939
        %1715 = vmatmul.mubr.bf16.gmra.mxu0 %v917
        %v1716 = vpop.f32.mrf.mxu0
        %v1717 = vadd.f32 %v1652, %v1716
        %v1718 = vpop.f32.mrf.mxu0
        %v1719 = vpop.f32.mrf.mxu0
        %v1720 = vadd.f32 %v1655, %v1719
        %v1721 = vpop.f32.mrf.mxu0
        %1722 = vmatprep.mubr.bf16.mxu0 %v940
        %1723 = vmatmul.mubr.bf16.gmra.mxu0 %v918
        %v1724 = vpop.f32.mrf.mxu0
        %v1725 = vadd.f32 %v1660, %v1724
        %v1726 = vpop.f32.mrf.mxu0
        %v1727 = vpop.f32.mrf.mxu0
        %v1728 = vadd.f32 %v1663, %v1727
        %v1729 = vpop.f32.mrf.mxu0
        %1730 = vmatprep.mubr.bf16.mxu0 %v951
        %1731 = vmatmul.mubr.bf16.gmra.mxu0 %v946
        %v1732 = vpop.f32.mrf.mxu0
        %v1733 = vadd.f32 %v1668, %v1732
        %v1734 = vpop.f32.mrf.mxu0
        %v1735 = vpop.f32.mrf.mxu0
        %v1736 = vadd.f32 %v1671, %v1735
        %v1737 = vpop.f32.mrf.mxu0
        %1738 = vdwg.mxu0
        %1739 = vmatprep.subr.bf16.mxu0 0
        %1740 = vmatpush1.bf16.msra.mxu0 %v1455
        %1741 = vmatprep.subr.bf16.mxu0 0
        %1742 = vmatpush1.bf16.msra.mxu0 %v1454
        %1743 = vmatprep.subr.bf16.mxu0 0
        %1744 = vmatpush1.bf16.msra.mxu0 %v1453
        %1745 = vmatprep.subr.bf16.mxu0 0
        %1746 = vmatpush1.bf16.msra.mxu0 %v1452
        %1747 = vmatprep.subr.bf16.mxu0 0
        %1748 = vmatpush1.bf16.msra.mxu0 %v1451
        %1749 = vmatprep.subr.bf16.mxu0 0
        %1750 = vmatpush1.bf16.msra.mxu0 %v1450
        %1751 = vmatprep.subr.bf16.mxu0 0
        %1752 = vmatpush1.bf16.msra.mxu0 %v1449
        %1753 = vmatprep.subr.bf16.mxu0 0
        %1754 = vmatpush1.bf16.msra.mxu0 %v1448
        %1755 = vmatprep.subr.bf16.mxu0 0
        %1756 = vmatpush2.bf16.msra.mxu0 %v1463
        %1757 = vmatprep.subr.bf16.mxu0 0
        %1758 = vmatpush2.bf16.msra.mxu0 %v1462
        %1759 = vmatprep.subr.bf16.mxu0 0
        %1760 = vmatpush2.bf16.msra.mxu0 %v1461
        %1761 = vmatprep.subr.bf16.mxu0 0
        %1762 = vmatpush2.bf16.msra.mxu0 %v1460
        %1763 = vmatprep.subr.bf16.mxu0 0
        %1764 = vmatpush2.bf16.msra.mxu0 %v1459
        %1765 = vmatprep.subr.bf16.mxu0 0
        %1766 = vmatpush2.bf16.msra.mxu0 %v1458
        %1767 = vmatprep.subr.bf16.mxu0 0
        %1768 = vmatpush2.bf16.msra.mxu0 %v1457
        %1769 = vmatprep.subr.bf16.mxu0 0
        %1770 = vmatpush2.bf16.msra.mxu0 %v1456
        %1771 = vmatprep.mubr.bf16.mxu0 %v917
        %1772 = vmatmul.mubr.bf16.gmra.mxu0 %v913
        %v1773 = vpop.f32.mrf.mxu0
        %v1774 = vadd.f32 %v1709, %v1773
        %v1775 = vpop.f32.mrf.mxu0
        %v1776 = vpop.f32.mrf.mxu0
        %v1777 = vadd.f32 %v1712, %v1776
        %v1778 = vpop.f32.mrf.mxu0
        %1779 = vmatprep.mubr.bf16.mxu0 %v918
        %1780 = vmatmul.mubr.bf16.gmra.mxu0 %v914
        %v1781 = vpop.f32.mrf.mxu0
        %v1782 = vadd.f32 %v1717, %v1781
        %v1783 = vpop.f32.mrf.mxu0
        %v1784 = vpop.f32.mrf.mxu0
        %v1785 = vadd.f32 %v1720, %v1784
        %v1786 = vpop.f32.mrf.mxu0
        %1787 = vmatprep.mubr.bf16.mxu0 %v946
        %1788 = vmatmul.mubr.bf16.gmra.mxu0 %v945
        %v1789 = vpop.f32.mrf.mxu0
        %v1790 = vadd.f32 %v1725, %v1789
        %v1791 = vpop.f32.mrf.mxu0
        %v1792 = vpop.f32.mrf.mxu0
        %v1793 = vadd.f32 %v1728, %v1792
        %v1794 = vpop.f32.mrf.mxu0
        %1795 = vmatprep.mubr.bf16.mxu0 %v956
        %1796 = vmatmul.mubr.bf16.gmra.mxu0 %v955
        %v1797 = vpop.f32.mrf.mxu0
        %v1798 = vadd.f32 %v1733, %v1797
        %v1799 = vpop.f32.mrf.mxu0
        %v1800 = vpop.f32.mrf.mxu0
        %v1801 = vadd.f32 %v1736, %v1800
        %v1802 = vpop.f32.mrf.mxu0
        %1803 = vdwg.mxu0
        %1804 = vmatprep.subr.bf16.mxu0 0
        %1805 = vmatpush1.bf16.msra.mxu0 %v1471
        %1806 = vmatprep.subr.bf16.mxu0 0
        %1807 = vmatpush1.bf16.msra.mxu0 %v1470
        %1808 = vmatprep.subr.bf16.mxu0 0
        %1809 = vmatpush1.bf16.msra.mxu0 %v1469
        %1810 = vmatprep.subr.bf16.mxu0 0
        %1811 = vmatpush1.bf16.msra.mxu0 %v1468
        %1812 = vmatprep.subr.bf16.mxu0 0
        %1813 = vmatpush1.bf16.msra.mxu0 %v1467
        %1814 = vmatprep.subr.bf16.mxu0 0
        %1815 = vmatpush1.bf16.msra.mxu0 %v1466
        %1816 = vmatprep.subr.bf16.mxu0 0
        %1817 = vmatpush1.bf16.msra.mxu0 %v1465
        %1818 = vmatprep.subr.bf16.mxu0 0
        %1819 = vmatpush1.bf16.msra.mxu0 %v1464
        %1820 = vmatprep.subr.bf16.mxu0 0
        %1821 = vmatpush2.bf16.msra.mxu0 0
        %1822 = vmatprep.subr.bf16.mxu0 0
        %1823 = vmatpush2.bf16.msra.mxu0 0
        %1824 = vmatprep.subr.bf16.mxu0 0
        %1825 = vmatpush2.bf16.msra.mxu0 0
        %1826 = vmatprep.subr.bf16.mxu0 0
        %1827 = vmatpush2.bf16.msra.mxu0 0
        %1828 = vmatprep.subr.bf16.mxu0 0
        %1829 = vmatpush2.bf16.msra.mxu0 0
        %1830 = vmatprep.subr.bf16.mxu0 0
        %1831 = vmatpush2.bf16.msra.mxu0 0
        %1832 = vmatprep.subr.bf16.mxu0 0
        %1833 = vmatpush2.bf16.msra.mxu0 0
        %1834 = vmatprep.subr.bf16.mxu0 0
        %1835 = vmatpush2.bf16.msra.mxu0 0
        %1836 = vmatprep.mubr.bf16.mxu0 0
        %1837 = vmatmul.mubr.bf16.gmra.mxu0 %v939
        %v1838 = vpop.f32.mrf.mxu0
        %v1839 = vadd.f32 %v1774, %v1838
        %v1840 = vpop.f32.mrf.mxu0
        %v1841 = vpop.f32.mrf.mxu0
        %v1842 = vadd.f32 %v1777, %v1841
        %v1843 = vpop.f32.mrf.mxu0
        %1844 = vmatprep.mubr.bf16.mxu0 0
        %1845 = vmatmul.mubr.bf16.gmra.mxu0 %v940
        %v1846 = vpop.f32.mrf.mxu0
        %v1847 = vadd.f32 %v1782, %v1846
        %v1848 = vpop.f32.mrf.mxu0
        %v1849 = vpop.f32.mrf.mxu0
        %v1850 = vadd.f32 %v1785, %v1849
        %v1851 = vpop.f32.mrf.mxu0
        %1852 = vmatprep.mubr.bf16.mxu0 0
        %1853 = vmatmul.mubr.bf16.gmra.mxu0 %v951
        %v1854 = vpop.f32.mrf.mxu0
        %v1855 = vadd.f32 %v1790, %v1854
        %v1856 = vpop.f32.mrf.mxu0
        %v1857 = vpop.f32.mrf.mxu0
        %v1858 = vadd.f32 %v1793, %v1857
        %v1859 = vpop.f32.mrf.mxu0
        %1860 = vmatprep.mubr.bf16.mxu0 0
        %1861 = vmatmul.mubr.bf16.gmra.mxu0 %v960
        %v1862 = vpop.f32.mrf.mxu0
        %v1863 = vadd.f32 %v1798, %v1862
        %v1864 = vpop.f32.mrf.mxu0
        %v1865 = vpop.f32.mrf.mxu0
        %v1866 = vadd.f32 %v1801, %v1865
        %v1867 = vpop.f32.mrf.mxu0
        %1868 = vdwg.mxu0
        %v1869 = vmax.f32 %v1839, 0.0
        %v1870 = vmax.f32 %v1842, 0.0
        %v1871 = vmax.f32 %v1847, 0.0
        %v1872 = vmax.f32 %v1850, 0.0
        %v1873 = vmax.f32 %v1855, 0.0
        %v1874 = vmax.f32 %v1858, 0.0
        %v1875 = vmax.f32 %v1863, 0.0
        %v1876 = vmax.f32 %v1866, 0.0
        %v1877 = vpack.c.bf16 %v1870, %v1869
        %v1878 = vpack.c.bf16 %v1872, %v1871
        %v1879 = vpack.c.bf16 %v1874, %v1873
        %v1880 = vpack.c.bf16 %v1876, %v1875
        %v1881 = vld [vmem:[#allocation9] sm:$0xf]
        %v1882 = vld [vmem:[#allocation9 + $0x4] sm:$0xf]
        %v1883 = vld [vmem:[#allocation9 + $0x8] sm:$0xf]
        %v1884 = vld [vmem:[#allocation9 + $0xc] sm:$0xf]
        %v1885 = vld [vmem:[#allocation9 + $0x10] sm:$0xf]
        %v1886 = vld [vmem:[#allocation9 + $0x14] sm:$0xf]
        %v1887 = vld [vmem:[#allocation9 + $0x18] sm:$0xf]
        %v1888 = vld [vmem:[#allocation9 + $0x1c] sm:$0xf]
        %v1889 = vld [vmem:[#allocation9 + $0x20] sm:$0xf]
        %v1890 = vld [vmem:[#allocation9 + $0x24] sm:$0xf]
        %v1891 = vld [vmem:[#allocation9 + $0x28] sm:$0xf]
        %v1892 = vld [vmem:[#allocation9 + $0x2c] sm:$0xf]
        %v1893 = vld [vmem:[#allocation9 + $0x30] sm:$0xf]
        %v1894 = vld [vmem:[#allocation9 + $0x34] sm:$0xf]
        %v1895 = vld [vmem:[#allocation9 + $0x38] sm:$0xf]
        %v1896 = vld [vmem:[#allocation9 + $0x3c] sm:$0xf]
        %v1897 = vld [vmem:[%s6] sm:$0x1]
        %v1899 = vlaneseq
        %v1900 = vshrl.u32 %v1899, 7
        %v1901 = vsub.s32 0, %v1900
        %v1902 = vrot.slane %v1897, %v1901
        %v1920 = vunpack.c.l.b16 %v1881
        %v1921 = vunpack.c.l.b16 %v1882
        %v1922 = vunpack.c.l.b16 %v1883
        %v1923 = vunpack.c.l.b16 %v1884
        %v1924 = vunpack.c.l.b16 %v1885
        %v1925 = vunpack.c.l.b16 %v1886
        %v1926 = vunpack.c.l.b16 %v1887
        %v1927 = vunpack.c.l.b16 %v1888
        %v1928 = vunpack.c.l.b16 %v1889
        %v1929 = vunpack.c.l.b16 %v1890
        %v1930 = vunpack.c.l.b16 %v1891
        %v1931 = vunpack.c.l.b16 %v1892
        %v1932 = vunpack.c.l.b16 %v1893
        %v1933 = vunpack.c.l.b16 %v1894
        %v1934 = vunpack.c.l.b16 %v1895
        %v1935 = vunpack.c.l.b16 %v1896
        %v1936 = vpack.c.b16 %v1921, %v1920
        %v1937 = vpack.c.b16 %v1923, %v1922
        %v1938 = vpack.c.b16 %v1925, %v1924
        %v1939 = vpack.c.b16 %v1927, %v1926
        %v1940 = vpack.c.b16 %v1929, %v1928
        %v1941 = vpack.c.b16 %v1931, %v1930
        %v1942 = vpack.c.b16 %v1933, %v1932
        %v1943 = vpack.c.b16 %v1935, %v1934
        %1952 = vmatprep.subr.bf16.mxu0 0
        %1953 = vmatpush1.bf16.msra.mxu0 %v1943
        %1954 = vmatprep.subr.bf16.mxu0 0
        %1955 = vmatpush1.bf16.msra.mxu0 %v1942
        %1956 = vmatprep.subr.bf16.mxu0 0
        %1957 = vmatpush1.bf16.msra.mxu0 %v1941
        %1958 = vmatprep.subr.bf16.mxu0 0
        %1959 = vmatpush1.bf16.msra.mxu0 %v1940
        %1960 = vmatprep.subr.bf16.mxu0 0
        %1961 = vmatpush1.bf16.msra.mxu0 %v1939
        %1962 = vmatprep.subr.bf16.mxu0 0
        %1963 = vmatpush1.bf16.msra.mxu0 %v1938
        %1964 = vmatprep.subr.bf16.mxu0 0
        %1965 = vmatpush1.bf16.msra.mxu0 %v1937
        %1966 = vmatprep.subr.bf16.mxu0 0
        %1967 = vmatpush1.bf16.msra.mxu0 %v1936
        %1968 = vmatprep.subr.bf16.mxu0 0
        %1969 = vmatpush2.bf16.msra.mxu0 0
        %1970 = vmatprep.subr.bf16.mxu0 0
        %1971 = vmatpush2.bf16.msra.mxu0 0
        %1972 = vmatprep.subr.bf16.mxu0 0
        %1973 = vmatpush2.bf16.msra.mxu0 0
        %1974 = vmatprep.subr.bf16.mxu0 0
        %1975 = vmatpush2.bf16.msra.mxu0 0
        %1976 = vmatprep.subr.bf16.mxu0 0
        %1977 = vmatpush2.bf16.msra.mxu0 0
        %1978 = vmatprep.subr.bf16.mxu0 0
        %1979 = vmatpush2.bf16.msra.mxu0 0
        %1980 = vmatprep.subr.bf16.mxu0 0
        %1981 = vmatpush2.bf16.msra.mxu0 0
        %1982 = vmatprep.subr.bf16.mxu0 0
        %1983 = vmatpush2.bf16.msra.mxu0 0
        %1984 = vmatprep.mubr.bf16.mxu0 0
        %1985 = vmatmul.mubr.bf16.gmra.mxu0 %v1877
        %v1986 = vpop.f32.mrf.mxu0
        %v1987 = vadd.f32 %v1902, %v1986
        %v1988 = vpop.f32.mrf.mxu0
        %v1989 = vpop.f32.mrf.mxu0
        %v1990 = vadd.f32 %v1902, %v1989
        %v1991 = vpop.f32.mrf.mxu0
        %1992 = vmatprep.mubr.bf16.mxu0 0
        %1993 = vmatmul.mubr.bf16.gmra.mxu0 %v1878
        %v1994 = vpop.f32.mrf.mxu0
        %v1995 = vadd.f32 %v1902, %v1994
        %v1996 = vpop.f32.mrf.mxu0
        %v1997 = vpop.f32.mrf.mxu0
        %v1998 = vadd.f32 %v1902, %v1997
        %v1999 = vpop.f32.mrf.mxu0
        %2000 = vmatprep.mubr.bf16.mxu0 0
        %2001 = vmatmul.mubr.bf16.gmra.mxu0 %v1879
        %v2002 = vpop.f32.mrf.mxu0
        %v2003 = vadd.f32 %v1902, %v2002
        %v2004 = vpop.f32.mrf.mxu0
        %v2005 = vpop.f32.mrf.mxu0
        %v2006 = vadd.f32 %v1902, %v2005
        %v2007 = vpop.f32.mrf.mxu0
        %2008 = vmatprep.mubr.bf16.mxu0 0
        %2009 = vmatmul.mubr.bf16.gmra.mxu0 %v1880
        %v2010 = vpop.f32.mrf.mxu0
        %v2011 = vadd.f32 %v1902, %v2010
        %v2012 = vpop.f32.mrf.mxu0
        %v2013 = vpop.f32.mrf.mxu0
        %v2014 = vadd.f32 %v1902, %v2013
        %v2015 = vpop.f32.mrf.mxu0
        %2016 = vdwg.mxu0
        %v2017 = vld [vmem:[#allocation2 + $0x10] sm:$0xff]
        %v2018 = vld [vmem:[#allocation2 + $0x18] sm:$0xff]
        %v2019 = vld [vmem:[#allocation2 + $0x20] sm:$0xff]
        %v2020 = vld [vmem:[#allocation2 + $0x28] sm:$0xff]
        %v2021 = vld [vmem:[#allocation2 + $0x30] sm:$0xff]
        %v2022 = vld [vmem:[#allocation2 + $0x38] sm:$0xff]
        %v2023 = vld [vmem:[#allocation2 + $0x40] sm:$0xff]
        %v2024 = vld [vmem:[#allocation2 + $0x48] sm:$0xff]
        %v2025 = vadd.f32 %v1987, %v2017
        %v2026 = vadd.f32 %v1990, %v2018
        %v2027 = vadd.f32 %v1995, %v2019
        %v2028 = vadd.f32 %v1998, %v2020
        %v2029 = vadd.f32 %v2003, %v2021
        %v2030 = vadd.f32 %v2006, %v2022
        %v2031 = vadd.f32 %v2011, %v2023
        %v2032 = vadd.f32 %v2014, %v2024
        %v2033 = vmax.f32 %v2025, 0.0
        %v2034 = vmax.f32 %v2026, 0.0
        %v2035 = vmax.f32 %v2027, 0.0
        %v2036 = vmax.f32 %v2028, 0.0
        %v2037 = vmax.f32 %v2029, 0.0
        %v2038 = vmax.f32 %v2030, 0.0
        %v2039 = vmax.f32 %v2031, 0.0
        %v2040 = vmax.f32 %v2032, 0.0
        %2041 = vst [vmem:[%s288] sm:$0xff] %v2033
        %2042 = vst [vmem:[%s288 + $0x8] sm:$0xff] %v2034
        %2043 = vst [vmem:[%s288 + $0x10] sm:$0xff] %v2035
        %2044 = vst [vmem:[%s288 + $0x18] sm:$0xff] %v2036
        %2045 = vst [vmem:[%s288 + $0x20] sm:$0xff] %v2037
        %2046 = vst [vmem:[%s288 + $0x28] sm:$0xff] %v2038
        %2047 = vst [vmem:[%s288 + $0x30] sm:$0xff] %v2039
        %2048 = vst [vmem:[%s288 + $0x38] sm:$0xff] %v2040
        %s2049 = sand.u32 %s171, 1
        %s2050 = scalar_lea.sflag [#allocation6], %s2049
        %s2051 = sand.u32 %s171, 1
        %s2052 = smul.addr %s2051, 64
        %s2053 = scalar_lea.vmem [#allocation10], %s2052
        // Predicated region
        $region69: #{tpu_custom_call.1} parent=43 // pred_check
          %p2054 = pneg %p181
        $region70: #{tpu_custom_call.1} parent=43 // pred_check_branch
          %2056 = sbr.rel (%p2054) target = $region72
        $region71: #{tpu_custom_call.1} parent=43 // pred_region
          %s2057 = smul.u32 8, %s28
          %s2059 = ssub.s32 1024, 1024
          %2060 = vsyncadd %s2050, %s2059
          %s2061 = smul.addr %s27, 32
          %s2062 = sadd.s32 %s2057, %s2061
          %s2063 = smul.addr %s2062, 128
          %s2064 = scalar_lea.hbm %s7, %s2063
          %s2065 = sshll.u32 %s2053, 4
          %s2066 = int_to_ptr.vmem [resolvable:$true] %s2065
          %2071 = dma.vmem_to_hbm [thread:$0]  %s2066, 1024, %s2064, %s2050, 128, 128, 8
        $region72: #{tpu_custom_call.1} parent=43 // pred_fallthru
          _
      $region44: #{tpu_custom_call.1} parent=5 // pred_fallthru
        _
      %p2072 = scmp.le.s32.totalorder 2, %s18
      // Predicated region
      $region73: #{tpu_custom_call.1} parent=5 // pred_check
        %p2073 = pneg %p2072
      $region74: #{tpu_custom_call.1} parent=5 // pred_check_branch
        %2075 = sbr.rel (%p2073) target = $region76
      $region75: #{tpu_custom_call.1} parent=5 // pred_region
        %s2076 = ssub.s32 %s18, 2
        // Predicated region
        $region77: #{tpu_custom_call.1} parent=75 // pred_check
          %p2077 = pneg %p187
        $region78: #{tpu_custom_call.1} parent=75 // pred_check_branch
          %2079 = sbr.rel (%p2077) target = $region80
        $region79: #{tpu_custom_call.1} parent=75 // pred_region
          %s2080 = sand.u32 %s172, 1
          %s2081 = scalar_lea.sflag [#allocation6], %s2080
          %s2082 = sand.u32 %s172, 1
          %s2083 = smul.addr %s2082, 64
          %s2084 = scalar_lea.vmem [#allocation10], %s2083
          %2085 = dma.done %s2081, 1024
        $region80: #{tpu_custom_call.1} parent=75 // pred_fallthru
          _
      $region76: #{tpu_custom_call.1} parent=5 // pred_fallthru
        _
    $region6: #{tpu_custom_call.1} parent=1 // loop_footer
      %s22 = sadd.s32 1, %s18
    $region7: #{tpu_custom_call.1} parent=1 // loop_footer_branch
      %17 = sbr.rel target = $region3
    $region8: #{tpu_custom_call.1} parent=1 // loop_exit
      _
    %2086 = vsyncpa [#allocation5], 1
    %s2087 = scalar_lea.sflag [#allocation5], 1
    %2088 = vsyncpa %s2087, 1
    %2089 = vsyncpa [#allocation8], 1
    %2090 = vsyncpa [#allocation6], 1
    %s2091 = scalar_lea.sflag [#allocation6], 1
    %2092 = vsyncpa %s2091, 1
  %2093 = vsyncmov [#allocation3]
  %s2094 = vpop.sfrf %2093
  %p2095 = scmp.eq.s32.totalorder %s2094, 0
  %p2096 = pneg %p2095
  %2098 = shalt.err (%p2096)
  %s2099 = scalar_lea.sflag [#allocation3], 1
  %2100 = vsyncmov %s2099
  %s2101 = vpop.sfrf %2100
  %p2102 = scmp.eq.s32.totalorder %s2101, 0
  %p2103 = pneg %p2102
  %2105 = shalt.err (%p2103)
  %s2106 = scalar_lea.sflag [#allocation3], 2
  %2107 = vsyncmov %s2106
  %s2108 = vpop.sfrf %2107
  %p2109 = scmp.eq.s32.totalorder %s2108, 0
  %p2110 = pneg %p2109
  %2112 = shalt.err (%p2110)

</llo_original>
